<compile_context>
chip_gen: v7x
topology: tpu7x:2x2x1
jax: 0.10.0
libtpu: 0.0.40
codegen_flags: <defaults>
</compile_context>

<pallas_src>
import math
from functools import partial

import jax
import jax.numpy as jnp
import numpy as np
from jax.experimental import pallas as pl
from jax.experimental.pallas import tpu as pltpu

VMEM_LIMIT = 48 * 1024 * 1024  # fits v5e/v6e (128 MiB) and v7x (64 MiB) VMEM


def _pick_tile(dim, target, align):
    """Largest `align`-multiple tile <= target that divides dim, else full dim."""
    if dim <= target:
        return dim
    t = (target // align) * align
    while t >= align:
        if dim % t == 0:
            return t
        t -= align
    return dim


# --------------------------------------------------------------------------
# Kernel 1: per-row inverse RMS scale  (reads x once, writes (M, 1))
# --------------------------------------------------------------------------
def _row_scale_kernel(x_ref, o_ref, *, eps):
    x = x_ref[...].astype(jnp.float32)
    o_ref[...] = jax.lax.rsqrt(jnp.mean(x * x, axis=-1, keepdims=True) + eps)


def pallas_row_scale(x2d, eps, *, tm_target=256):
    m, d = x2d.shape
    tm = _pick_tile(m, tm_target, 8)
    return pl.pallas_call(
        partial(_row_scale_kernel, eps=eps),
        out_shape=jax.ShapeDtypeStruct((m, 1), jnp.float32),
        grid=(m // tm,),
        in_specs=[pl.BlockSpec((tm, d), lambda i: (i, 0))],
        out_specs=pl.BlockSpec((tm, 1), lambda i: (i, 0)),
        compiler_params=pltpu.CompilerParams(
            dimension_semantics=("parallel",),
            vmem_limit_bytes=VMEM_LIMIT),
    )(x2d)


# --------------------------------------------------------------------------
# Kernel 2: fused RMSNorm + GEMM   out = ((x * scale * gamma) @ W)
# --------------------------------------------------------------------------
def _norm_matmul_kernel(scale_ref, gamma_ref, x_ref, w_ref, o_ref, acc_ref):
    @pl.when(pl.program_id(2) == 0)
    def _():
        acc_ref[...] = jnp.zeros_like(acc_ref)

    xn = (x_ref[...].astype(jnp.float32) * scale_ref[...] * gamma_ref[...])
    acc_ref[...] += jnp.dot(xn.astype(jnp.bfloat16), w_ref[...],
                            preferred_element_type=jnp.float32)

    @pl.when(pl.program_id(2) == pl.num_programs(2) - 1)
    def _():
        o_ref[...] = acc_ref[...].astype(o_ref.dtype)


def pallas_norm_matmul(scale, gamma, x2d, w, *, tm_t=256, tn_t=256, tk_t=512):
    m, k = x2d.shape
    _, n = w.shape
    tm = _pick_tile(m, tm_t, 8)
    tn = _pick_tile(n, tn_t, 128)
    tk = _pick_tile(k, tk_t, 128)
    return pl.pallas_call(
        _norm_matmul_kernel,
        out_shape=jax.ShapeDtypeStruct((m, n), jnp.bfloat16),
        grid=(m // tm, n // tn, k // tk),
        in_specs=[
            pl.BlockSpec((tm, 1), lambda i, j, kk: (i, 0)),
            pl.BlockSpec((1, tk), lambda i, j, kk: (0, kk)),
            pl.BlockSpec((tm, tk), lambda i, j, kk: (i, kk)),
            pl.BlockSpec((tk, tn), lambda i, j, kk: (kk, j)),
        ],
        out_specs=pl.BlockSpec((tm, tn), lambda i, j, kk: (i, j)),
        scratch_shapes=[pltpu.VMEM((tm, tn), jnp.float32)],
        compiler_params=pltpu.CompilerParams(
            dimension_semantics=("parallel", "parallel", "arbitrary"),
            vmem_limit_bytes=VMEM_LIMIT),
        cost_estimate=pl.CostEstimate(
            flops=2 * m * n * k, transcendentals=0,
            bytes_accessed=2 * (m * k + k * n + m * n)),
    )(scale, gamma.reshape(1, -1).astype(jnp.float32), x2d, w)


# --------------------------------------------------------------------------
# Kernel 3: GEMM with fused residual add   out = residual + x @ W
# --------------------------------------------------------------------------
def _matmul_residual_kernel(x_ref, w_ref, r_ref, o_ref, acc_ref):
    @pl.when(pl.program_id(2) == 0)
    def _():
        acc_ref[...] = jnp.zeros_like(acc_ref)

    acc_ref[...] += jnp.dot(x_ref[...], w_ref[...],
                            preferred_element_type=jnp.float32)

    @pl.when(pl.program_id(2) == pl.num_programs(2) - 1)
    def _():
        o_ref[...] = (r_ref[...].astype(jnp.float32)
                      + acc_ref[...]).astype(o_ref.dtype)


def pallas_matmul_residual(x2d, w, res, *, tm_t=256, tn_t=256, tk_t=512):
    m, k = x2d.shape
    _, n = w.shape
    tm = _pick_tile(m, tm_t, 8)
    tn = _pick_tile(n, tn_t, 128)
    tk = _pick_tile(k, tk_t, 128)
    return pl.pallas_call(
        _matmul_residual_kernel,
        out_shape=jax.ShapeDtypeStruct((m, n), jnp.bfloat16),
        grid=(m // tm, n // tn, k // tk),
        in_specs=[
            pl.BlockSpec((tm, tk), lambda i, j, kk: (i, kk)),
            pl.BlockSpec((tk, tn), lambda i, j, kk: (kk, j)),
            pl.BlockSpec((tm, tn), lambda i, j, kk: (i, j)),
        ],
        out_specs=pl.BlockSpec((tm, tn), lambda i, j, kk: (i, j)),
        scratch_shapes=[pltpu.VMEM((tm, tn), jnp.float32)],
        compiler_params=pltpu.CompilerParams(
            dimension_semantics=("parallel", "parallel", "arbitrary"),
            vmem_limit_bytes=VMEM_LIMIT),
        cost_estimate=pl.CostEstimate(
            flops=2 * m * n * k, transcendentals=0,
            bytes_accessed=2 * (m * k + k * n + 2 * m * n)),
    )(x2d, w, res)


# --------------------------------------------------------------------------
# Kernel 4: fused RMSNorm + w1/w3 GEMMs + SwiGLU   g = silu(xn@w1) * (xn@w3)
# --------------------------------------------------------------------------
def _norm_swiglu_kernel(scale_ref, gamma_ref, x_ref, w1_ref, w3_ref, o_ref,
                        acc1_ref, acc3_ref):
    @pl.when(pl.program_id(2) == 0)
    def _():
        acc1_ref[...] = jnp.zeros_like(acc1_ref)
        acc3_ref[...] = jnp.zeros_like(acc3_ref)

    xn = (x_ref[...].astype(jnp.float32) * scale_ref[...]
          * gamma_ref[...]).astype(jnp.bfloat16)
    acc1_ref[...] += jnp.dot(xn, w1_ref[...], preferred_element_type=jnp.float32)
    acc3_ref[...] += jnp.dot(xn, w3_ref[...], preferred_element_type=jnp.float32)

    @pl.when(pl.program_id(2) == pl.num_programs(2) - 1)
    def _():
        h1 = acc1_ref[...]
        o_ref[...] = (h1 * jax.nn.sigmoid(h1) * acc3_ref[...]).astype(o_ref.dtype)


def pallas_norm_swiglu(scale, gamma, x2d, w1, w3, *, tm_t=256, tn_t=256, tk_t=512):
    m, k = x2d.shape
    _, n = w1.shape
    tm = _pick_tile(m, tm_t, 8)
    tn = _pick_tile(n, tn_t, 128)
    tk = _pick_tile(k, tk_t, 128)
    return pl.pallas_call(
        _norm_swiglu_kernel,
        out_shape=jax.ShapeDtypeStruct((m, n), jnp.bfloat16),
        grid=(m // tm, n // tn, k // tk),
        in_specs=[
            pl.BlockSpec((tm, 1), lambda i, j, kk: (i, 0)),
            pl.BlockSpec((1, tk), lambda i, j, kk: (0, kk)),
            pl.BlockSpec((tm, tk), lambda i, j, kk: (i, kk)),
            pl.BlockSpec((tk, tn), lambda i, j, kk: (kk, j)),
            pl.BlockSpec((tk, tn), lambda i, j, kk: (kk, j)),
        ],
        out_specs=pl.BlockSpec((tm, tn), lambda i, j, kk: (i, j)),
        scratch_shapes=[pltpu.VMEM((tm, tn), jnp.float32),
                        pltpu.VMEM((tm, tn), jnp.float32)],
        compiler_params=pltpu.CompilerParams(
            dimension_semantics=("parallel", "parallel", "arbitrary"),
            vmem_limit_bytes=VMEM_LIMIT),
        cost_estimate=pl.CostEstimate(
            flops=4 * m * n * k, transcendentals=m * n,
            bytes_accessed=2 * (m * k + 2 * k * n + m * n)),
    )(scale, gamma.reshape(1, -1).astype(jnp.float32), x2d, w1, w3)


# --------------------------------------------------------------------------
# Kernel 5: flash-style attention (online softmax, never materializes (S,S))
# --------------------------------------------------------------------------
def _flash_attn_kernel(q_ref, k_ref, v_ref, mask_ref, o_ref,
                       m_ref, l_ref, acc_ref, *, scale):
    kv = pl.program_id(2)

    @pl.when(kv == 0)
    def _():
        m_ref[...] = jnp.full_like(m_ref, -1e30)
        l_ref[...] = jnp.zeros_like(l_ref)
        acc_ref[...] = jnp.zeros_like(acc_ref)

    q = q_ref[0]                                  # (tq, hd) bf16
    k = k_ref[0]                                  # (tk, hd) bf16
    v = v_ref[0]                                  # (tk, hd) bf16
    s = jax.lax.dot_general(q, k, (((1,), (1,)), ((), ())),
                            preferred_element_type=jnp.float32)
    s = s * scale + mask_ref[...]

    m_prev = m_ref[...]
    m_new = jnp.maximum(m_prev, jnp.max(s, axis=-1, keepdims=True))
    alpha = jnp.exp(m_prev - m_new)
    p = jnp.exp(s - m_new)
    l_ref[...] = alpha * l_ref[...] + jnp.sum(p, axis=-1, keepdims=True)
    acc_ref[...] = alpha * acc_ref[...] + jnp.dot(
        p.astype(v.dtype), v, preferred_element_type=jnp.float32)
    m_ref[...] = m_new

    @pl.when(kv == pl.num_programs(2) - 1)
    def _():
        o_ref[0] = (acc_ref[...]
                    * pl.reciprocal(l_ref[...], approx=True)).astype(o_ref.dtype)


def pallas_flash_attention(q, k, v, mask, scale, *, tq_t=256, tk_t=256):
    bh, s, hd = q.shape
    tq = _pick_tile(s, tq_t, 8)
    tk = _pick_tile(s, tk_t, 128)
    q_spec = pl.BlockSpec((1, tq, hd), lambda b, qi, ki: (b, qi, 0))
    kv_spec = pl.BlockSpec((1, tk, hd), lambda b, qi, ki: (b, ki, 0))
    return pl.pallas_call(
        partial(_flash_attn_kernel, scale=scale),
        out_shape=jax.ShapeDtypeStruct((bh, s, hd), q.dtype),
        grid=(bh, s // tq, s // tk),
        in_specs=[q_spec, kv_spec, kv_spec,
                  pl.BlockSpec((tq, tk), lambda b, qi, ki: (qi, ki))],
        out_specs=q_spec,
        scratch_shapes=[pltpu.VMEM((tq, 1), jnp.float32),
                        pltpu.VMEM((tq, 1), jnp.float32),
                        pltpu.VMEM((tq, hd), jnp.float32)],
        compiler_params=pltpu.CompilerParams(
            dimension_semantics=("parallel", "parallel", "arbitrary"),
            vmem_limit_bytes=VMEM_LIMIT),
        cost_estimate=pl.CostEstimate(
            flops=4 * bh * s * s * hd, transcendentals=bh * s * s,
            bytes_accessed=2 * 4 * bh * s * hd + 4 * s * s),
    )(q, k, v, mask)


# --------------------------------------------------------------------------
# Kernel 6: final standalone RMSNorm (f32 output)
# --------------------------------------------------------------------------
def _rmsnorm_kernel(gamma_ref, x_ref, o_ref, *, eps):
    x = x_ref[...].astype(jnp.float32)
    ms = jnp.mean(x * x, axis=-1, keepdims=True)
    o_ref[...] = x * jax.lax.rsqrt(ms + eps) * gamma_ref[...]


def pallas_rmsnorm(x2d, gamma, eps, *, tm_t=256):
    m, d = x2d.shape
    tm = _pick_tile(m, tm_t, 8)
    return pl.pallas_call(
        partial(_rmsnorm_kernel, eps=eps),
        out_shape=jax.ShapeDtypeStruct((m, d), jnp.float32),
        grid=(m // tm,),
        in_specs=[pl.BlockSpec((1, d), lambda i: (0, 0)),
                  pl.BlockSpec((tm, d), lambda i: (i, 0))],
        out_specs=pl.BlockSpec((tm, d), lambda i: (i, 0)),
        compiler_params=pltpu.CompilerParams(
            dimension_semantics=("parallel",),
            vmem_limit_bytes=VMEM_LIMIT),
    )(gamma.reshape(1, -1).astype(jnp.float32), x2d)


# --------------------------------------------------------------------------
# Model glue (plain JAX)
# --------------------------------------------------------------------------
def precompute_freqs_cis(dim, end, theta=10000.0):
    freqs = 1.0 / (theta ** (jnp.arange(0, dim, 2)[: dim // 2].astype(jnp.float32) / dim))
    t = jnp.arange(end, dtype=jnp.float32)
    freqs = jnp.outer(t, freqs)                               # (end, dim//2)
    return jnp.cos(freqs), jnp.sin(freqs)


def apply_rotary_emb(xq, xk, cos, sin):
    # xq, xk: (B, S, H, hd) bf16; cos/sin: (S, hd//2) f32. Rotation in f32.
    b, s, h, hd = xq.shape
    c = cos[None, :, None, :]
    sn = sin[None, :, None, :]

    def rot(x):
        xf = x.astype(jnp.float32).reshape(b, s, h, hd // 2, 2)
        xr, xi = xf[..., 0], xf[..., 1]
        out = jnp.stack([xr * c - xi * sn, xr * sn + xi * c], axis=-1)
        return out.reshape(b, s, h, hd).astype(jnp.bfloat16)

    return rot(xq), rot(xk)


def transformer_block(h, lp, cos, sin, mask, num_heads, eps):
    b, s, d = h.shape
    m = b * s
    hd = d // num_heads
    x2 = h.reshape(m, d)

    # Attention: RMSNorm fused into the fused QKV projection.
    s1 = pallas_row_scale(x2, eps)                                    # (M,1) f32
    qkv = pallas_norm_matmul(s1, lp["attn_norm_w"], x2, lp["wqkv"])   # (M,3D) bf16
    qkv = qkv.reshape(b, s, 3, num_heads, hd)
    xq, xk, xv = qkv[:, :, 0], qkv[:, :, 1], qkv[:, :, 2]
    xq, xk = apply_rotary_emb(xq, xk, cos, sin)

    def to_bh(t):  # (B,S,H,hd) -> (B*H, S, hd)
        return t.transpose(0, 2, 1, 3).reshape(b * num_heads, s, hd)

    o = pallas_flash_attention(to_bh(xq), to_bh(xk), to_bh(xv), mask,
                               1.0 / math.sqrt(hd))                   # (BH,S,hd) bf16
    o = o.reshape(b, num_heads, s, hd).transpose(0, 2, 1, 3).reshape(m, d)
    h1 = pallas_matmul_residual(o, lp["wo"], x2)                      # (M,D) bf16

    # FFN: RMSNorm fused into w1/w3 + SwiGLU; residual fused into w2 GEMM.
    s2 = pallas_row_scale(h1, eps)
    g = pallas_norm_swiglu(s2, lp["ffn_norm_w"], h1, lp["w1"], lp["w3"])
    h2 = pallas_matmul_residual(g, lp["w2"], h1)                      # (M,D) bf16
    return h2.reshape(b, s, d)


def swapllama_forward(params, tokens, mask, freqs_cos, freqs_sin, *,
                      order, num_heads, eps):
    b, s = tokens.shape
    d = params["embed"].shape[1]
    # TODO(synk): embedding gather stays in JAX glue (no clean Pallas gather here).
    h = jnp.take(params["embed"], tokens, axis=0)                     # (B,S,D) bf16
    cos, sin = freqs_cos[:s], freqs_sin[:s]
    mask_arr = (jnp.zeros((s, s), jnp.float32) if mask is None
                else mask.astype(jnp.float32))
    # SwapSeq: apply blocks in the caller-provided order (start_p=0, no KV cache).
    for v in order:
        h = transformer_block(h, params["layers"][v], cos, sin, mask_arr,
                              num_heads, eps)
    return pallas_rmsnorm(h.reshape(b * s, d), params["norm_w"], eps).reshape(b, s, d)


# --------------------------------------------------------------------------
# Pure-JAX reference mirroring the kernel's bf16/f32 precision choices
# --------------------------------------------------------------------------
def ref_forward(params, tokens, mask, freqs_cos, freqs_sin, *, order, num_heads, eps):
    b, s = tokens.shape
    d = params["embed"].shape[1]
    hd = d // num_heads
    h = jnp.take(params["embed"], tokens, axis=0)
    cos, sin = freqs_cos[:s], freqs_sin[:s]
    mask_arr = (jnp.zeros((s, s), jnp.float32) if mask is None
                else mask.astype(jnp.float32))
    for vidx in order:
        lp = params["layers"][vidx]
        x2 = h.reshape(b * s, d)
        xf = x2.astype(jnp.float32)
        s1 = jax.lax.rsqrt(jnp.mean(xf * xf, -1, keepdims=True) + eps)
        xn = (xf * s1 * lp["attn_norm_w"][None, :]).astype(jnp.bfloat16)
        qkv = jnp.dot(xn, lp["wqkv"],
                      preferred_element_type=jnp.float32).astype(jnp.bfloat16)
        qkv = qkv.reshape(b, s, 3, num_heads, hd)
        xq, xk, xv = qkv[:, :, 0], qkv[:, :, 1], qkv[:, :, 2]
        xq, xk = apply_rotary_emb(xq, xk, cos, sin)
        q, k, v = (t.transpose(0, 2, 1, 3) for t in (xq, xk, xv))
        sc = jnp.einsum("bhqd,bhkd->bhqk", q, k,
                        preferred_element_type=jnp.float32) / math.sqrt(hd) + mask_arr
        p = jax.nn.softmax(sc, axis=-1)
        o = jnp.einsum("bhqk,bhkd->bhqd", p.astype(jnp.bfloat16), v,
                       preferred_element_type=jnp.float32).astype(jnp.bfloat16)
        o = o.transpose(0, 2, 1, 3).reshape(b * s, d)
        h1 = (xf + jnp.dot(o, lp["wo"],
                           preferred_element_type=jnp.float32)).astype(jnp.bfloat16)
        h1f = h1.astype(jnp.float32)
        s2 = jax.lax.rsqrt(jnp.mean(h1f * h1f, -1, keepdims=True) + eps)
        hn = (h1f * s2 * lp["ffn_norm_w"][None, :]).astype(jnp.bfloat16)
        a1 = jnp.dot(hn, lp["w1"], preferred_element_type=jnp.float32)
        a3 = jnp.dot(hn, lp["w3"], preferred_element_type=jnp.float32)
        g = (a1 * jax.nn.sigmoid(a1) * a3).astype(jnp.bfloat16)
        h2 = (h1f + jnp.dot(g, lp["w2"],
                            preferred_element_type=jnp.float32)).astype(jnp.bfloat16)
        h = h2.reshape(b, s, d)
    hf = h.reshape(b * s, d).astype(jnp.float32)
    out = hf * jax.lax.rsqrt(jnp.mean(hf * hf, -1, keepdims=True) + eps) \
        * params["norm_w"][None, :]
    return out.reshape(b, s, d)


# --------------------------------------------------------------------------
# Deterministic parameter init (shapes per SwapLLama.__init__; bf16 weights)
# --------------------------------------------------------------------------
def init_params(key, vocab_size, dmodel, num_heads, n_layers, multiple_of,
                ffn_dim_multiplier=None):
    hidden = int(2 * (4 * dmodel) / 3)
    if ffn_dim_multiplier is not None:
        hidden = int(ffn_dim_multiplier * hidden)
    hidden = multiple_of * ((hidden + multiple_of - 1) // multiple_of)

    keys = jax.random.split(key, 1 + n_layers)

    def dense(k, shape):
        return (jax.random.normal(k, shape, jnp.float32) * 0.02).astype(jnp.bfloat16)

    params = {
        "embed": jax.random.normal(keys[0], (vocab_size, dmodel),
                                   jnp.float32).astype(jnp.bfloat16),
        "norm_w": jnp.ones((dmodel,), jnp.float32),
        "layers": [],
    }
    for i in range(n_layers):
        lk = jax.random.split(keys[1 + i], 7)
        wq = dense(lk[0], (dmodel, dmodel))
        wk = dense(lk[1], (dmodel, dmodel))
        wv = dense(lk[2], (dmodel, dmodel))
        params["layers"].append({
            "wqkv": jnp.concatenate([wq, wk, wv], axis=1),     # (D, 3D) bf16
            "wo": dense(lk[3], (dmodel, dmodel)),
            "w1": dense(lk[4], (dmodel, hidden)),
            "w3": dense(lk[5], (dmodel, hidden)),
            "w2": dense(lk[6], (hidden, dmodel)),
            "attn_norm_w": jnp.ones((dmodel,), jnp.float32),
            "ffn_norm_w": jnp.ones((dmodel,), jnp.float32),
        })
    return params


# --------------------------------------------------------------------------
if __name__ == "__main__":
    # Small config consistent with SwapLLama's constructor.
    vocab_size, dmodel, num_heads, n_layers = 128, 32, 4, 2
    multiple_of, norm_eps, ctx_size = 32, 1e-5, 64
    B, S = 2, 8

    key = jax.random.PRNGKey(0)
    pkey, tkey = jax.random.split(key)
    params = init_params(pkey, vocab_size, dmodel, num_heads, n_layers, multiple_of)
    tokens = jax.random.randint(tkey, (B, S), 0, vocab_size, dtype=jnp.int32)

    freqs_cos, freqs_sin = precompute_freqs_cis(dmodel // num_heads, ctx_size)
    causal_mask = jnp.where(jnp.triu(jnp.ones((S, S), dtype=bool), 1),
                            -jnp.inf, 0.0).astype(jnp.float32)
    order = (1, 0)  # SwapSeq applies layers in this (swapped) order

    fwd = jax.jit(partial(swapllama_forward, order=order,
                          num_heads=num_heads, eps=norm_eps))
    out = fwd(params, tokens, causal_mask, freqs_cos, freqs_sin)
    out = jax.block_until_ready(out)

    ref = ref_forward(params, tokens, causal_mask, freqs_cos, freqs_sin,
                      order=order, num_heads=num_heads, eps=norm_eps)
    assert out.shape == (B, S, dmodel)
    np.testing.assert_allclose(np.asarray(out), np.asarray(ref),
                               rtol=2e-2, atol=2e-2)
    print("KERNEL_OK")
</pallas_src>

<mosaic_0001>
module attributes {stable_mosaic.version = 11 : i64} {
  func.func @_row_scale_kernel(%arg0: i32, %arg1: memref<16x32xbf16, #tpu.memory_space<vmem>>, %arg2: memref<16x1xf32, #tpu.memory_space<vmem>>) attributes {dimension_semantics = [#tpu.dimension_semantics<parallel>], iteration_bounds = array<i64: 1>, scalar_prefetch = 0 : i64, scratch_operands = 0 : i64, tpu.core_type = #tpu.core_type<tc>, window_params = [{transform_indices = @transform_0, window_bounds = array<i64: 16, 32>}, {transform_indices = @transform_1, window_bounds = array<i64: 16, 1>}]} {
    %c0 = arith.constant 0 : index
    %c0_0 = arith.constant 0 : index
    %0 = vector.load %arg1[%c0, %c0_0] : memref<16x32xbf16, #tpu.memory_space<vmem>>, vector<16x32xbf16>
    %1 = arith.extf %0 : vector<16x32xbf16> to vector<16x32xf32>
    %2 = arith.mulf %1, %1 : vector<16x32xf32>
    %cst = arith.constant dense<0.000000e+00> : vector<16xf32>
    %3 = vector.multi_reduction <add>, %2, %cst [1] : vector<16x32xf32> to vector<16xf32>
    %4 = vector.shape_cast %3 : vector<16xf32> to vector<16x1xf32>
    %cst_1 = arith.constant 3.200000e+01 : f32
    %5 = vector.broadcast %cst_1 : f32 to vector<16x1xf32>
    %6 = arith.divf %4, %5 : vector<16x1xf32>
    %cst_2 = arith.constant 9.99999974E-6 : f32
    %7 = vector.broadcast %cst_2 : f32 to vector<16x1xf32>
    %8 = arith.addf %6, %7 : vector<16x1xf32>
    %9 = math.rsqrt %8 : vector<16x1xf32>
    %c0_3 = arith.constant 0 : index
    %c0_4 = arith.constant 0 : index
    %10 = vector.load %arg2[%c0_3, %c0_4] : memref<16x1xf32, #tpu.memory_space<vmem>>, vector<16x1xf32>
    tpu.vector_store %arg2[%c0_3, %c0_4], %9 {strides = array<i32>} : memref<16x1xf32, #tpu.memory_space<vmem>>, vector<16x1xf32>,
    return
  }
  func.func @transform_0(%arg0: i32) -> (i32, i32) {
    %c0_i32 = arith.constant 0 : i32
    %c0_i32_0 = arith.constant 0 : i32
    return %arg0, %c0_i32 : i32, i32
  }
  func.func @transform_1(%arg0: i32) -> (i32, i32) {
    %c0_i32 = arith.constant 0 : i32
    %c0_i32_0 = arith.constant 0 : i32
    return %arg0, %c0_i32 : i32, i32
  }
}

module attributes {stable_mosaic.version = 11 : i64} {
  func.func @_norm_matmul_kernel(%arg0: i32, %arg1: i32, %arg2: i32, %arg3: memref<16x1xf32, #tpu.memory_space<vmem>>, %arg4: memref<1x32xf32, #tpu.memory_space<vmem>>, %arg5: memref<16x32xbf16, #tpu.memory_space<vmem>>, %arg6: memref<32x96xbf16, #tpu.memory_space<vmem>>, %arg7: memref<16x96xbf16, #tpu.memory_space<vmem>>, %arg8: memref<16x96xf32, #tpu.memory_space<vmem>>) attributes {dimension_semantics = [#tpu.dimension_semantics<parallel>, #tpu.dimension_semantics<parallel>, #tpu.dimension_semantics<arbitrary>], iteration_bounds = array<i64: 1, 1, 1>, scalar_prefetch = 0 : i64, scratch_operands = 1 : i64, tpu.core_type = #tpu.core_type<tc>, window_params = [{transform_indices = @transform_0, window_bounds = array<i64: 16, 1>}, {transform_indices = @transform_1, window_bounds = array<i64: 1, 32>}, {transform_indices = @transform_2, window_bounds = array<i64: 16, 32>}, {transform_indices = @transform_3, window_bounds = array<i64: 32, 96>}, {transform_indices = @transform_4, window_bounds = array<i64: 16, 96>}]} {
    %c0_i32 = arith.constant 0 : i32
    %0 = arith.cmpi eq, %arg2, %c0_i32 : i32
    %1 = arith.extui %0 : i1 to i32
    %c0_i32_0 = arith.constant 0 : i32
    %2 = arith.cmpi ne, %1, %c0_i32_0 : i32
    scf.if %2 {
      %cst_14 = arith.constant 0.000000e+00 : f32
      %20 = vector.broadcast %cst_14 : f32 to vector<16x96xf32>
      %c0_15 = arith.constant 0 : index
      %c0_16 = arith.constant 0 : index
      %21 = vector.load %arg8[%c0_15, %c0_16] : memref<16x96xf32, #tpu.memory_space<vmem>>, vector<16x96xf32>
      tpu.vector_store %arg8[%c0_15, %c0_16], %20 {strides = array<i32>} : memref<16x96xf32, #tpu.memory_space<vmem>>, vector<16x96xf32>,
    } else {
    }
    %c0 = arith.constant 0 : index
    %c0_1 = arith.constant 0 : index
    %3 = vector.load %arg5[%c0, %c0_1] : memref<16x32xbf16, #tpu.memory_space<vmem>>, vector<16x32xbf16>
    %4 = arith.extf %3 : vector<16x32xbf16> to vector<16x32xf32>
    %c0_2 = arith.constant 0 : index
    %c0_3 = arith.constant 0 : index
    %5 = vector.load %arg3[%c0_2, %c0_3] : memref<16x1xf32, #tpu.memory_space<vmem>>, vector<16x1xf32>
    %6 = vector.broadcast %5 : vector<16x1xf32> to vector<16x32xf32>
    %7 = arith.mulf %4, %6 : vector<16x32xf32>
    %c0_4 = arith.constant 0 : index
    %c0_5 = arith.constant 0 : index
    %8 = vector.load %arg4[%c0_4, %c0_5] : memref<1x32xf32, #tpu.memory_space<vmem>>, vector<1x32xf32>
    %9 = vector.broadcast %8 : vector<1x32xf32> to vector<16x32xf32>
    %10 = arith.mulf %7, %9 : vector<16x32xf32>
    %c0_6 = arith.constant 0 : index
    %c0_7 = arith.constant 0 : index
    %11 = vector.load %arg8[%c0_6, %c0_7] : memref<16x96xf32, #tpu.memory_space<vmem>>, vector<16x96xf32>
    %12 = arith.truncf %10 : vector<16x32xf32> to vector<16x32xbf16>
    %c0_8 = arith.constant 0 : index
    %c0_9 = arith.constant 0 : index
    %13 = vector.load %arg6[%c0_8, %c0_9] : memref<32x96xbf16, #tpu.memory_space<vmem>>, vector<32x96xbf16>
    %cst = arith.constant dense<0.000000e+00> : vector<16x96xf32>
    %14 = tpu.matmul %12, %13, %cst {dimension_numbers = #tpu.dot_dimension_numbers<[1], [0], [0], [1], [0, 0, 1, 1], [], []>} : vector<16x32xbf16>, vector<32x96xbf16>, vector<16x96xf32> -> vector<16x96xf32>
    %15 = arith.addf %11, %14 : vector<16x96xf32>
    %c0_10 = arith.constant 0 : index
    %c0_11 = arith.constant 0 : index
    %16 = vector.load %arg8[%c0_10, %c0_11] : memref<16x96xf32, #tpu.memory_space<vmem>>, vector<16x96xf32>
    tpu.vector_store %arg8[%c0_10, %c0_11], %15 {strides = array<i32>} : memref<16x96xf32, #tpu.memory_space<vmem>>, vector<16x96xf32>,
    %c0_i32_12 = arith.constant 0 : i32
    %17 = arith.cmpi eq, %arg2, %c0_i32_12 : i32
    %18 = arith.extui %17 : i1 to i32
    %c0_i32_13 = arith.constant 0 : i32
    %19 = arith.cmpi ne, %18, %c0_i32_13 : i32
    scf.if %19 {
      %c0_14 = arith.constant 0 : index
      %c0_15 = arith.constant 0 : index
      %20 = vector.load %arg8[%c0_14, %c0_15] : memref<16x96xf32, #tpu.memory_space<vmem>>, vector<16x96xf32>
      %21 = arith.truncf %20 : vector<16x96xf32> to vector<16x96xbf16>
      %c0_16 = arith.constant 0 : index
      %c0_17 = arith.constant 0 : index
      %22 = vector.load %arg7[%c0_16, %c0_17] : memref<16x96xbf16, #tpu.memory_space<vmem>>, vector<16x96xbf16>
      tpu.vector_store %arg7[%c0_16, %c0_17], %21 {strides = array<i32>} : memref<16x96xbf16, #tpu.memory_space<vmem>>, vector<16x96xbf16>,
    } else {
    }
    return
  }
  func.func @transform_0(%arg0: i32, %arg1: i32, %arg2: i32) -> (i32, i32) {
    %c0_i32 = arith.constant 0 : i32
    %c0_i32_0 = arith.constant 0 : i32
    return %arg0, %c0_i32 : i32, i32
  }
  func.func @transform_1(%arg0: i32, %arg1: i32, %arg2: i32) -> (i32, i32) {
    %c0_i32 = arith.constant 0 : i32
    %c0_i32_0 = arith.constant 0 : i32
    return %c0_i32, %arg2 : i32, i32
  }
  func.func @transform_2(%arg0: i32, %arg1: i32, %arg2: i32) -> (i32, i32) {
    %c0_i32 = arith.constant 0 : i32
    return %arg0, %arg2 : i32, i32
  }
  func.func @transform_3(%arg0: i32, %arg1: i32, %arg2: i32) -> (i32, i32) {
    %c0_i32 = arith.constant 0 : i32
    return %arg2, %arg1 : i32, i32
  }
  func.func @transform_4(%arg0: i32, %arg1: i32, %arg2: i32) -> (i32, i32) {
    %c0_i32 = arith.constant 0 : i32
    return %arg0, %arg1 : i32, i32
  }
}

module attributes {stable_mosaic.version = 11 : i64} {
  func.func @_flash_attn_kernel(%arg0: i32, %arg1: i32, %arg2: i32, %arg3: memref<1x8x8xbf16, #tpu.memory_space<vmem>>, %arg4: memref<1x8x8xbf16, #tpu.memory_space<vmem>>, %arg5: memref<1x8x8xbf16, #tpu.memory_space<vmem>>, %arg6: memref<8x8xf32, #tpu.memory_space<vmem>>, %arg7: memref<1x8x8xbf16, #tpu.memory_space<vmem>>, %arg8: memref<8x1xf32, #tpu.memory_space<vmem>>, %arg9: memref<8x1xf32, #tpu.memory_space<vmem>>, %arg10: memref<8x8xf32, #tpu.memory_space<vmem>>) attributes {dimension_semantics = [#tpu.dimension_semantics<parallel>, #tpu.dimension_semantics<parallel>, #tpu.dimension_semantics<arbitrary>], iteration_bounds = array<i64: 8, 1, 1>, scalar_prefetch = 0 : i64, scratch_operands = 3 : i64, tpu.core_type = #tpu.core_type<tc>, window_params = [{transform_indices = @transform_0, window_bounds = array<i64: 1, 8, 8>}, {transform_indices = @transform_1, window_bounds = array<i64: 1, 8, 8>}, {transform_indices = @transform_2, window_bounds = array<i64: 1, 8, 8>}, {transform_indices = @transform_3, window_bounds = array<i64: 8, 8>}, {transform_indices = @transform_4, window_bounds = array<i64: 1, 8, 8>}]} {
    %c0_i32 = arith.constant 0 : i32
    %0 = arith.cmpi eq, %arg2, %c0_i32 : i32
    %1 = arith.extui %0 : i1 to i32
    %c0_i32_0 = arith.constant 0 : i32
    %2 = arith.cmpi ne, %1, %c0_i32_0 : i32
    scf.if %2 {
      %cst_29 = arith.constant -1.000000e+30 : f32
      %40 = vector.broadcast %cst_29 : f32 to vector<8x1xf32>
      %c0_30 = arith.constant 0 : index
      %c0_31 = arith.constant 0 : index
      %41 = vector.load %arg8[%c0_30, %c0_31] : memref<8x1xf32, #tpu.memory_space<vmem>>, vector<8x1xf32>
      tpu.vector_store %arg8[%c0_30, %c0_31], %40 {strides = array<i32>} : memref<8x1xf32, #tpu.memory_space<vmem>>, vector<8x1xf32>,
      %cst_32 = arith.constant 0.000000e+00 : f32
      %42 = vector.broadcast %cst_32 : f32 to vector<8x1xf32>
      %c0_33 = arith.constant 0 : index
      %c0_34 = arith.constant 0 : index
      %43 = vector.load %arg9[%c0_33, %c0_34] : memref<8x1xf32, #tpu.memory_space<vmem>>, vector<8x1xf32>
      tpu.vector_store %arg9[%c0_33, %c0_34], %42 {strides = array<i32>} : memref<8x1xf32, #tpu.memory_space<vmem>>, vector<8x1xf32>,
      %cst_35 = arith.constant 0.000000e+00 : f32
      %44 = vector.broadcast %cst_35 : f32 to vector<8x8xf32>
      %c0_36 = arith.constant 0 : index
      %c0_37 = arith.constant 0 : index
      %45 = vector.load %arg10[%c0_36, %c0_37] : memref<8x8xf32, #tpu.memory_space<vmem>>, vector<8x8xf32>
      tpu.vector_store %arg10[%c0_36, %c0_37], %44 {strides = array<i32>} : memref<8x8xf32, #tpu.memory_space<vmem>>, vector<8x8xf32>,
    } else {
    }
    %c0 = arith.constant 0 : index
    %c0_1 = arith.constant 0 : index
    %c0_2 = arith.constant 0 : index
    %3 = vector.load %arg3[%c0, %c0_1, %c0_2] : memref<1x8x8xbf16, #tpu.memory_space<vmem>>, vector<1x8x8xbf16>
    %4 = vector.shape_cast %3 : vector<1x8x8xbf16> to vector<8x8xbf16>
    %c0_3 = arith.constant 0 : index
    %c0_4 = arith.constant 0 : index
    %c0_5 = arith.constant 0 : index
    %5 = vector.load %arg4[%c0_3, %c0_4, %c0_5] : memref<1x8x8xbf16, #tpu.memory_space<vmem>>, vector<1x8x8xbf16>
    %6 = vector.shape_cast %5 : vector<1x8x8xbf16> to vector<8x8xbf16>
    %c0_6 = arith.constant 0 : index
    %c0_7 = arith.constant 0 : index
    %c0_8 = arith.constant 0 : index
    %7 = vector.load %arg5[%c0_6, %c0_7, %c0_8] : memref<1x8x8xbf16, #tpu.memory_space<vmem>>, vector<1x8x8xbf16>
    %8 = vector.shape_cast %7 : vector<1x8x8xbf16> to vector<8x8xbf16>
    %cst = arith.constant dense<0.000000e+00> : vector<8x8xf32>
    %9 = tpu.matmul %4, %6, %cst {dimension_numbers = #tpu.dot_dimension_numbers<[1], [1], [0], [0], [0, 0, 1, 0], [], []>} : vector<8x8xbf16>, vector<8x8xbf16>, vector<8x8xf32> -> vector<8x8xf32>
    %cst_9 = arith.constant 0.353553385 : f32
    %10 = vector.broadcast %cst_9 : f32 to vector<8x8xf32>
    %11 = arith.mulf %9, %10 : vector<8x8xf32>
    %c0_10 = arith.constant 0 : index
    %c0_11 = arith.constant 0 : index
    %12 = vector.load %arg6[%c0_10, %c0_11] : memref<8x8xf32, #tpu.memory_space<vmem>>, vector<8x8xf32>
    %13 = arith.addf %11, %12 : vector<8x8xf32>
    %c0_12 = arith.constant 0 : index
    %c0_13 = arith.constant 0 : index
    %14 = vector.load %arg8[%c0_12, %c0_13] : memref<8x1xf32, #tpu.memory_space<vmem>>, vector<8x1xf32>
    %cst_14 = arith.constant dense<0xFF800000> : vector<8xf32>
    %15 = vector.multi_reduction <maximumf>, %13, %cst_14 [1] : vector<8x8xf32> to vector<8xf32>
    %16 = vector.shape_cast %15 : vector<8xf32> to vector<8x1xf32>
    %17 = arith.maximumf %14, %16 : vector<8x1xf32>
    %18 = arith.subf %14, %17 : vector<8x1xf32>
    %19 = math.exp %18 : vector<8x1xf32>
    %20 = vector.broadcast %17 : vector<8x1xf32> to vector<8x8xf32>
    %21 = arith.subf %13, %20 : vector<8x8xf32>
    %22 = math.exp %21 : vector<8x8xf32>
    %c0_15 = arith.constant 0 : index
    %c0_16 = arith.constant 0 : index
    %23 = vector.load %arg9[%c0_15, %c0_16] : memref<8x1xf32, #tpu.memory_space<vmem>>, vector<8x1xf32>
    %24 = arith.mulf %19, %23 : vector<8x1xf32>
    %cst_17 = arith.constant dense<0.000000e+00> : vector<8xf32>
    %25 = vector.multi_reduction <add>, %22, %cst_17 [1] : vector<8x8xf32> to vector<8xf32>
    %26 = vector.shape_cast %25 : vector<8xf32> to vector<8x1xf32>
    %27 = arith.addf %24, %26 : vector<8x1xf32>
    %c0_18 = arith.constant 0 : index
    %c0_19 = arith.constant 0 : index
    %28 = vector.load %arg9[%c0_18, %c0_19] : memref<8x1xf32, #tpu.memory_space<vmem>>, vector<8x1xf32>
    tpu.vector_store %arg9[%c0_18, %c0_19], %27 {strides = array<i32>} : memref<8x1xf32, #tpu.memory_space<vmem>>, vector<8x1xf32>,
    %c0_20 = arith.constant 0 : index
    %c0_21 = arith.constant 0 : index
    %29 = vector.load %arg10[%c0_20, %c0_21] : memref<8x8xf32, #tpu.memory_space<vmem>>, vector<8x8xf32>
    %30 = vector.broadcast %19 : vector<8x1xf32> to vector<8x8xf32>
    %31 = arith.mulf %30, %29 : vector<8x8xf32>
    %32 = arith.truncf %22 : vector<8x8xf32> to vector<8x8xbf16>
    %cst_22 = arith.constant dense<0.000000e+00> : vector<8x8xf32>
    %33 = tpu.matmul %32, %8, %cst_22 {dimension_numbers = #tpu.dot_dimension_numbers<[1], [0], [0], [1], [0, 0, 1, 1], [], []>} : vector<8x8xbf16>, vector<8x8xbf16>, vector<8x8xf32> -> vector<8x8xf32>
    %34 = arith.addf %31, %33 : vector<8x8xf32>
    %c0_23 = arith.constant 0 : index
    %c0_24 = arith.constant 0 : index
    %35 = vector.load %arg10[%c0_23, %c0_24] : memref<8x8xf32, #tpu.memory_space<vmem>>, vector<8x8xf32>
    tpu.vector_store %arg10[%c0_23, %c0_24], %34 {strides = array<i32>} : memref<8x8xf32, #tpu.memory_space<vmem>>, vector<8x8xf32>,
    %c0_25 = arith.constant 0 : index
    %c0_26 = arith.constant 0 : index
    %36 = vector.load %arg8[%c0_25, %c0_26] : memref<8x1xf32, #tpu.memory_space<vmem>>, vector<8x1xf32>
    tpu.vector_store %arg8[%c0_25, %c0_26], %17 {strides = array<i32>} : memref<8x1xf32, #tpu.memory_space<vmem>>, vector<8x1xf32>,
    %c0_i32_27 = arith.constant 0 : i32
    %37 = arith.cmpi eq, %arg2, %c0_i32_27 : i32
    %38 = arith.extui %37 : i1 to i32
    %c0_i32_28 = arith.constant 0 : i32
    %39 = arith.cmpi ne, %38, %c0_i32_28 : i32
    scf.if %39 {
      %c0_29 = arith.constant 0 : index
      %c0_30 = arith.constant 0 : index
      %40 = vector.load %arg10[%c0_29, %c0_30] : memref<8x8xf32, #tpu.memory_space<vmem>>, vector<8x8xf32>
      %c0_31 = arith.constant 0 : index
      %c0_32 = arith.constant 0 : index
      %41 = vector.load %arg9[%c0_31, %c0_32] : memref<8x1xf32, #tpu.memory_space<vmem>>, vector<8x1xf32>
      %42 = tpu.reciprocal %41 {approx = true} : vector<8x1xf32> -> vector<8x1xf32>
      %43 = vector.broadcast %42 : vector<8x1xf32> to vector<8x8xf32>
      %44 = arith.mulf %40, %43 : vector<8x8xf32>
      %45 = arith.truncf %44 : vector<8x8xf32> to vector<8x8xbf16>
      %c0_33 = arith.constant 0 : index
      %c0_34 = arith.constant 0 : index
      %c0_35 = arith.constant 0 : index
      %46 = vector.load %arg7[%c0_33, %c0_34, %c0_35] : memref<1x8x8xbf16, #tpu.memory_space<vmem>>, vector<1x8x8xbf16>
      %47 = vector.shape_cast %46 : vector<1x8x8xbf16> to vector<8x8xbf16>
      %48 = vector.shape_cast %45 : vector<8x8xbf16> to vector<1x8x8xbf16>
      tpu.vector_store %arg7[%c0_33, %c0_34, %c0_35], %48 {strides = array<i32>} : memref<1x8x8xbf16, #tpu.memory_space<vmem>>, vector<1x8x8xbf16>,
    } else {
    }
    return
  }
  func.func @transform_0(%arg0: i32, %arg1: i32, %arg2: i32) -> (i32, i32, i32) {
    %c0_i32 = arith.constant 0 : i32
    %c0_i32_0 = arith.constant 0 : i32
    return %arg0, %arg1, %c0_i32 : i32, i32, i32
  }
  func.func @transform_1(%arg0: i32, %arg1: i32, %arg2: i32) -> (i32, i32, i32) {
    %c0_i32 = arith.constant 0 : i32
    %c0_i32_0 = arith.constant 0 : i32
    return %arg0, %arg2, %c0_i32 : i32, i32, i32
  }
  func.func @transform_2(%arg0: i32, %arg1: i32, %arg2: i32) -> (i32, i32, i32) {
    %c0_i32 = arith.constant 0 : i32
    %c0_i32_0 = arith.constant 0 : i32
    return %arg0, %arg2, %c0_i32 : i32, i32, i32
  }
  func.func @transform_3(%arg0: i32, %arg1: i32, %arg2: i32) -> (i32, i32) {
    %c0_i32 = arith.constant 0 : i32
    return %arg1, %arg2 : i32, i32
  }
  func.func @transform_4(%arg0: i32, %arg1: i32, %arg2: i32) -> (i32, i32, i32) {
    %c0_i32 = arith.constant 0 : i32
    %c0_i32_0 = arith.constant 0 : i32
    return %arg0, %arg1, %c0_i32 : i32, i32, i32
  }
}

module attributes {stable_mosaic.version = 11 : i64} {
  func.func @_norm_swiglu_kernel(%arg0: i32, %arg1: i32, %arg2: i32, %arg3: memref<16x1xf32, #tpu.memory_space<vmem>>, %arg4: memref<1x32xf32, #tpu.memory_space<vmem>>, %arg5: memref<16x32xbf16, #tpu.memory_space<vmem>>, %arg6: memref<32x96xbf16, #tpu.memory_space<vmem>>, %arg7: memref<32x96xbf16, #tpu.memory_space<vmem>>, %arg8: memref<16x96xbf16, #tpu.memory_space<vmem>>, %arg9: memref<16x96xf32, #tpu.memory_space<vmem>>, %arg10: memref<16x96xf32, #tpu.memory_space<vmem>>) attributes {dimension_semantics = [#tpu.dimension_semantics<parallel>, #tpu.dimension_semantics<parallel>, #tpu.dimension_semantics<arbitrary>], iteration_bounds = array<i64: 1, 1, 1>, scalar_prefetch = 0 : i64, scratch_operands = 2 : i64, tpu.core_type = #tpu.core_type<tc>, window_params = [{transform_indices = @transform_0, window_bounds = array<i64: 16, 1>}, {transform_indices = @transform_1, window_bounds = array<i64: 1, 32>}, {transform_indices = @transform_2, window_bounds = array<i64: 16, 32>}, {transform_indices = @transform_3, window_bounds = array<i64: 32, 96>}, {transform_indices = @transform_4, window_bounds = array<i64: 32, 96>}, {transform_indices = @transform_5, window_bounds = array<i64: 16, 96>}]} {
    %c0_i32 = arith.constant 0 : i32
    %0 = arith.cmpi eq, %arg2, %c0_i32 : i32
    %1 = arith.extui %0 : i1 to i32
    %c0_i32_0 = arith.constant 0 : i32
    %2 = arith.cmpi ne, %1, %c0_i32_0 : i32
    scf.if %2 {
      %cst_21 = arith.constant 0.000000e+00 : f32
      %25 = vector.broadcast %cst_21 : f32 to vector<16x96xf32>
      %c0_22 = arith.constant 0 : index
      %c0_23 = arith.constant 0 : index
      %26 = vector.load %arg9[%c0_22, %c0_23] : memref<16x96xf32, #tpu.memory_space<vmem>>, vector<16x96xf32>
      tpu.vector_store %arg9[%c0_22, %c0_23], %25 {strides = array<i32>} : memref<16x96xf32, #tpu.memory_space<vmem>>, vector<16x96xf32>,
      %cst_24 = arith.constant 0.000000e+00 : f32
      %27 = vector.broadcast %cst_24 : f32 to vector<16x96xf32>
      %c0_25 = arith.constant 0 : index
      %c0_26 = arith.constant 0 : index
      %28 = vector.load %arg10[%c0_25, %c0_26] : memref<16x96xf32, #tpu.memory_space<vmem>>, vector<16x96xf32>
      tpu.vector_store %arg10[%c0_25, %c0_26], %27 {strides = array<i32>} : memref<16x96xf32, #tpu.memory_space<vmem>>, vector<16x96xf32>,
    } else {
    }
    %c0 = arith.constant 0 : index
    %c0_1 = arith.constant 0 : index
    %3 = vector.load %arg5[%c0, %c0_1] : memref<16x32xbf16, #tpu.memory_space<vmem>>, vector<16x32xbf16>
    %4 = arith.extf %3 : vector<16x32xbf16> to vector<16x32xf32>
    %c0_2 = arith.constant 0 : index
    %c0_3 = arith.constant 0 : index
    %5 = vector.load %arg3[%c0_2, %c0_3] : memref<16x1xf32, #tpu.memory_space<vmem>>, vector<16x1xf32>
    %6 = vector.broadcast %5 : vector<16x1xf32> to vector<16x32xf32>
    %7 = arith.mulf %4, %6 : vector<16x32xf32>
    %c0_4 = arith.constant 0 : index
    %c0_5 = arith.constant 0 : index
    %8 = vector.load %arg4[%c0_4, %c0_5] : memref<1x32xf32, #tpu.memory_space<vmem>>, vector<1x32xf32>
    %9 = vector.broadcast %8 : vector<1x32xf32> to vector<16x32xf32>
    %10 = arith.mulf %7, %9 : vector<16x32xf32>
    %11 = arith.truncf %10 : vector<16x32xf32> to vector<16x32xbf16>
    %c0_6 = arith.constant 0 : index
    %c0_7 = arith.constant 0 : index
    %12 = vector.load %arg9[%c0_6, %c0_7] : memref<16x96xf32, #tpu.memory_space<vmem>>, vector<16x96xf32>
    %c0_8 = arith.constant 0 : index
    %c0_9 = arith.constant 0 : index
    %13 = vector.load %arg6[%c0_8, %c0_9] : memref<32x96xbf16, #tpu.memory_space<vmem>>, vector<32x96xbf16>
    %cst = arith.constant dense<0.000000e+00> : vector<16x96xf32>
    %14 = tpu.matmul %11, %13, %cst {dimension_numbers = #tpu.dot_dimension_numbers<[1], [0], [0], [1], [0, 0, 1, 1], [], []>} : vector<16x32xbf16>, vector<32x96xbf16>, vector<16x96xf32> -> vector<16x96xf32>
    %15 = arith.addf %12, %14 : vector<16x96xf32>
    %c0_10 = arith.constant 0 : index
    %c0_11 = arith.constant 0 : index
    %16 = vector.load %arg9[%c0_10, %c0_11] : memref<16x96xf32, #tpu.memory_space<vmem>>, vector<16x96xf32>
    tpu.vector_store %arg9[%c0_10, %c0_11], %15 {strides = array<i32>} : memref<16x96xf32, #tpu.memory_space<vmem>>, vector<16x96xf32>,
    %c0_12 = arith.constant 0 : index
    %c0_13 = arith.constant 0 : index
    %17 = vector.load %arg10[%c0_12, %c0_13] : memref<16x96xf32, #tpu.memory_space<vmem>>, vector<16x96xf32>
    %c0_14 = arith.constant 0 : index
    %c0_15 = arith.constant 0 : index
    %18 = vector.load %arg7[%c0_14, %c0_15] : memref<32x96xbf16, #tpu.memory_space<vmem>>, vector<32x96xbf16>
    %cst_16 = arith.constant dense<0.000000e+00> : vector<16x96xf32>
    %19 = tpu.matmul %11, %18, %cst_16 {dimension_numbers = #tpu.dot_dimension_numbers<[1], [0], [0], [1], [0, 0, 1, 1], [], []>} : vector<16x32xbf16>, vector<32x96xbf16>, vector<16x96xf32> -> vector<16x96xf32>
    %20 = arith.addf %17, %19 : vector<16x96xf32>
    %c0_17 = arith.constant 0 : index
    %c0_18 = arith.constant 0 : index
    %21 = vector.load %arg10[%c0_17, %c0_18] : memref<16x96xf32, #tpu.memory_space<vmem>>, vector<16x96xf32>
    tpu.vector_store %arg10[%c0_17, %c0_18], %20 {strides = array<i32>} : memref<16x96xf32, #tpu.memory_space<vmem>>, vector<16x96xf32>,
    %c0_i32_19 = arith.constant 0 : i32
    %22 = arith.cmpi eq, %arg2, %c0_i32_19 : i32
    %23 = arith.extui %22 : i1 to i32
    %c0_i32_20 = arith.constant 0 : i32
    %24 = arith.cmpi ne, %23, %c0_i32_20 : i32
    scf.if %24 {
      %c0_21 = arith.constant 0 : index
      %c0_22 = arith.constant 0 : index
      %25 = vector.load %arg9[%c0_21, %c0_22] : memref<16x96xf32, #tpu.memory_space<vmem>>, vector<16x96xf32>
      %26 = arith.negf %25 : vector<16x96xf32>
      %27 = math.exp %26 : vector<16x96xf32>
      %cst_23 = arith.constant 1.000000e+00 : f32
      %28 = vector.broadcast %cst_23 : f32 to vector<16x96xf32>
      %29 = arith.addf %28, %27 : vector<16x96xf32>
      %30 = arith.divf %28, %29 : vector<16x96xf32>
      %31 = arith.mulf %25, %30 : vector<16x96xf32>
      %c0_24 = arith.constant 0 : index
      %c0_25 = arith.constant 0 : index
      %32 = vector.load %arg10[%c0_24, %c0_25] : memref<16x96xf32, #tpu.memory_space<vmem>>, vector<16x96xf32>
      %33 = arith.mulf %31, %32 : vector<16x96xf32>
      %34 = arith.truncf %33 : vector<16x96xf32> to vector<16x96xbf16>
      %c0_26 = arith.constant 0 : index
      %c0_27 = arith.constant 0 : index
      %35 = vector.load %arg8[%c0_26, %c0_27] : memref<16x96xbf16, #tpu.memory_space<vmem>>, vector<16x96xbf16>
      tpu.vector_store %arg8[%c0_26, %c0_27], %34 {strides = array<i32>} : memref<16x96xbf16, #tpu.memory_space<vmem>>, vector<16x96xbf16>,
    } else {
    }
    return
  }
  func.func @transform_0(%arg0: i32, %arg1: i32, %arg2: i32) -> (i32, i32) {
    %c0_i32 = arith.constant 0 : i32
    %c0_i32_0 = arith.constant 0 : i32
    return %arg0, %c0_i32 : i32, i32
  }
  func.func @transform_1(%arg0: i32, %arg1: i32, %arg2: i32) -> (i32, i32) {
    %c0_i32 = arith.constant 0 : i32
    %c0_i32_0 = arith.constant 0 : i32
    return %c0_i32, %arg2 : i32, i32
  }
  func.func @transform_2(%arg0: i32, %arg1: i32, %arg2: i32) -> (i32, i32) {
    %c0_i32 = arith.constant 0 : i32
    return %arg0, %arg2 : i32, i32
  }
  func.func @transform_3(%arg0: i32, %arg1: i32, %arg2: i32) -> (i32, i32) {
    %c0_i32 = arith.constant 0 : i32
    return %arg2, %arg1 : i32, i32
  }
  func.func @transform_4(%arg0: i32, %arg1: i32, %arg2: i32) -> (i32, i32) {
    %c0_i32 = arith.constant 0 : i32
    return %arg2, %arg1 : i32, i32
  }
  func.func @transform_5(%arg0: i32, %arg1: i32, %arg2: i32) -> (i32, i32) {
    %c0_i32 = arith.constant 0 : i32
    return %arg0, %arg1 : i32, i32
  }
}

module attributes {stable_mosaic.version = 11 : i64} {
  func.func @_matmul_residual_kernel(%arg0: i32, %arg1: i32, %arg2: i32, %arg3: memref<16x32xbf16, #tpu.memory_space<vmem>>, %arg4: memref<32x32xbf16, #tpu.memory_space<vmem>>, %arg5: memref<16x32xbf16, #tpu.memory_space<vmem>>, %arg6: memref<16x32xbf16, #tpu.memory_space<vmem>>, %arg7: memref<16x32xf32, #tpu.memory_space<vmem>>) attributes {dimension_semantics = [#tpu.dimension_semantics<parallel>, #tpu.dimension_semantics<parallel>, #tpu.dimension_semantics<arbitrary>], iteration_bounds = array<i64: 1, 1, 1>, scalar_prefetch = 0 : i64, scratch_operands = 1 : i64, tpu.core_type = #tpu.core_type<tc>, window_params = [{transform_indices = @transform_0, window_bounds = array<i64: 16, 32>}, {transform_indices = @transform_1, window_bounds = array<i64: 32, 32>}, {transform_indices = @transform_2, window_bounds = array<i64: 16, 32>}, {transform_indices = @transform_3, window_bounds = array<i64: 16, 32>}]} {
    %c0_i32 = arith.constant 0 : i32
    %0 = arith.cmpi eq, %arg2, %c0_i32 : i32
    %1 = arith.extui %0 : i1 to i32
    %c0_i32_0 = arith.constant 0 : i32
    %2 = arith.cmpi ne, %1, %c0_i32_0 : i32
    scf.if %2 {
      %cst_10 = arith.constant 0.000000e+00 : f32
      %12 = vector.broadcast %cst_10 : f32 to vector<16x32xf32>
      %c0_11 = arith.constant 0 : index
      %c0_12 = arith.constant 0 : index
      %13 = vector.load %arg7[%c0_11, %c0_12] : memref<16x32xf32, #tpu.memory_space<vmem>>, vector<16x32xf32>
      tpu.vector_store %arg7[%c0_11, %c0_12], %12 {strides = array<i32>} : memref<16x32xf32, #tpu.memory_space<vmem>>, vector<16x32xf32>,
    } else {
    }
    %c0 = arith.constant 0 : index
    %c0_1 = arith.constant 0 : index
    %3 = vector.load %arg7[%c0, %c0_1] : memref<16x32xf32, #tpu.memory_space<vmem>>, vector<16x32xf32>
    %c0_2 = arith.constant 0 : index
    %c0_3 = arith.constant 0 : index
    %4 = vector.load %arg3[%c0_2, %c0_3] : memref<16x32xbf16, #tpu.memory_space<vmem>>, vector<16x32xbf16>
    %c0_4 = arith.constant 0 : index
    %c0_5 = arith.constant 0 : index
    %5 = vector.load %arg4[%c0_4, %c0_5] : memref<32x32xbf16, #tpu.memory_space<vmem>>, vector<32x32xbf16>
    %cst = arith.constant dense<0.000000e+00> : vector<16x32xf32>
    %6 = tpu.matmul %4, %5, %cst {dimension_numbers = #tpu.dot_dimension_numbers<[1], [0], [0], [1], [0, 0, 1, 1], [], []>} : vector<16x32xbf16>, vector<32x32xbf16>, vector<16x32xf32> -> vector<16x32xf32>
    %7 = arith.addf %3, %6 : vector<16x32xf32>
    %c0_6 = arith.constant 0 : index
    %c0_7 = arith.constant 0 : index
    %8 = vector.load %arg7[%c0_6, %c0_7] : memref<16x32xf32, #tpu.memory_space<vmem>>, vector<16x32xf32>
    tpu.vector_store %arg7[%c0_6, %c0_7], %7 {strides = array<i32>} : memref<16x32xf32, #tpu.memory_space<vmem>>, vector<16x32xf32>,
    %c0_i32_8 = arith.constant 0 : i32
    %9 = arith.cmpi eq, %arg2, %c0_i32_8 : i32
    %10 = arith.extui %9 : i1 to i32
    %c0_i32_9 = arith.constant 0 : i32
    %11 = arith.cmpi ne, %10, %c0_i32_9 : i32
    scf.if %11 {
      %c0_10 = arith.constant 0 : index
      %c0_11 = arith.constant 0 : index
      %12 = vector.load %arg5[%c0_10, %c0_11] : memref<16x32xbf16, #tpu.memory_space<vmem>>, vector<16x32xbf16>
      %13 = arith.extf %12 : vector<16x32xbf16> to vector<16x32xf32>
      %c0_12 = arith.constant 0 : index
      %c0_13 = arith.constant 0 : index
      %14 = vector.load %arg7[%c0_12, %c0_13] : memref<16x32xf32, #tpu.memory_space<vmem>>, vector<16x32xf32>
      %15 = arith.addf %13, %14 : vector<16x32xf32>
      %16 = arith.truncf %15 : vector<16x32xf32> to vector<16x32xbf16>
      %c0_14 = arith.constant 0 : index
      %c0_15 = arith.constant 0 : index
      %17 = vector.load %arg6[%c0_14, %c0_15] : memref<16x32xbf16, #tpu.memory_space<vmem>>, vector<16x32xbf16>
      tpu.vector_store %arg6[%c0_14, %c0_15], %16 {strides = array<i32>} : memref<16x32xbf16, #tpu.memory_space<vmem>>, vector<16x32xbf16>,
    } else {
    }
    return
  }
  func.func @transform_0(%arg0: i32, %arg1: i32, %arg2: i32) -> (i32, i32) {
    %c0_i32 = arith.constant 0 : i32
    return %arg0, %arg2 : i32, i32
  }
  func.func @transform_1(%arg0: i32, %arg1: i32, %arg2: i32) -> (i32, i32) {
    %c0_i32 = arith.constant 0 : i32
    return %arg2, %arg1 : i32, i32
  }
  func.func @transform_2(%arg0: i32, %arg1: i32, %arg2: i32) -> (i32, i32) {
    %c0_i32 = arith.constant 0 : i32
    return %arg0, %arg1 : i32, i32
  }
  func.func @transform_3(%arg0: i32, %arg1: i32, %arg2: i32) -> (i32, i32) {
    %c0_i32 = arith.constant 0 : i32
    return %arg0, %arg1 : i32, i32
  }
}

module attributes {stable_mosaic.version = 11 : i64} {
  func.func @_matmul_residual_kernel(%arg0: i32, %arg1: i32, %arg2: i32, %arg3: memref<16x96xbf16, #tpu.memory_space<vmem>>, %arg4: memref<96x32xbf16, #tpu.memory_space<vmem>>, %arg5: memref<16x32xbf16, #tpu.memory_space<vmem>>, %arg6: memref<16x32xbf16, #tpu.memory_space<vmem>>, %arg7: memref<16x32xf32, #tpu.memory_space<vmem>>) attributes {dimension_semantics = [#tpu.dimension_semantics<parallel>, #tpu.dimension_semantics<parallel>, #tpu.dimension_semantics<arbitrary>], iteration_bounds = array<i64: 1, 1, 1>, scalar_prefetch = 0 : i64, scratch_operands = 1 : i64, tpu.core_type = #tpu.core_type<tc>, window_params = [{transform_indices = @transform_0, window_bounds = array<i64: 16, 96>}, {transform_indices = @transform_1, window_bounds = array<i64: 96, 32>}, {transform_indices = @transform_2, window_bounds = array<i64: 16, 32>}, {transform_indices = @transform_3, window_bounds = array<i64: 16, 32>}]} {
    %c0_i32 = arith.constant 0 : i32
    %0 = arith.cmpi eq, %arg2, %c0_i32 : i32
    %1 = arith.extui %0 : i1 to i32
    %c0_i32_0 = arith.constant 0 : i32
    %2 = arith.cmpi ne, %1, %c0_i32_0 : i32
    scf.if %2 {
      %cst_10 = arith.constant 0.000000e+00 : f32
      %12 = vector.broadcast %cst_10 : f32 to vector<16x32xf32>
      %c0_11 = arith.constant 0 : index
      %c0_12 = arith.constant 0 : index
      %13 = vector.load %arg7[%c0_11, %c0_12] : memref<16x32xf32, #tpu.memory_space<vmem>>, vector<16x32xf32>
      tpu.vector_store %arg7[%c0_11, %c0_12], %12 {strides = array<i32>} : memref<16x32xf32, #tpu.memory_space<vmem>>, vector<16x32xf32>,
    } else {
    }
    %c0 = arith.constant 0 : index
    %c0_1 = arith.constant 0 : index
    %3 = vector.load %arg7[%c0, %c0_1] : memref<16x32xf32, #tpu.memory_space<vmem>>, vector<16x32xf32>
    %c0_2 = arith.constant 0 : index
    %c0_3 = arith.constant 0 : index
    %4 = vector.load %arg3[%c0_2, %c0_3] : memref<16x96xbf16, #tpu.memory_space<vmem>>, vector<16x96xbf16>
    %c0_4 = arith.constant 0 : index
    %c0_5 = arith.constant 0 : index
    %5 = vector.load %arg4[%c0_4, %c0_5] : memref<96x32xbf16, #tpu.memory_space<vmem>>, vector<96x32xbf16>
    %cst = arith.constant dense<0.000000e+00> : vector<16x32xf32>
    %6 = tpu.matmul %4, %5, %cst {dimension_numbers = #tpu.dot_dimension_numbers<[1], [0], [0], [1], [0, 0, 1, 1], [], []>} : vector<16x96xbf16>, vector<96x32xbf16>, vector<16x32xf32> -> vector<16x32xf32>
    %7 = arith.addf %3, %6 : vector<16x32xf32>
    %c0_6 = arith.constant 0 : index
    %c0_7 = arith.constant 0 : index
    %8 = vector.load %arg7[%c0_6, %c0_7] : memref<16x32xf32, #tpu.memory_space<vmem>>, vector<16x32xf32>
    tpu.vector_store %arg7[%c0_6, %c0_7], %7 {strides = array<i32>} : memref<16x32xf32, #tpu.memory_space<vmem>>, vector<16x32xf32>,
    %c0_i32_8 = arith.constant 0 : i32
    %9 = arith.cmpi eq, %arg2, %c0_i32_8 : i32
    %10 = arith.extui %9 : i1 to i32
    %c0_i32_9 = arith.constant 0 : i32
    %11 = arith.cmpi ne, %10, %c0_i32_9 : i32
    scf.if %11 {
      %c0_10 = arith.constant 0 : index
      %c0_11 = arith.constant 0 : index
      %12 = vector.load %arg5[%c0_10, %c0_11] : memref<16x32xbf16, #tpu.memory_space<vmem>>, vector<16x32xbf16>
      %13 = arith.extf %12 : vector<16x32xbf16> to vector<16x32xf32>
      %c0_12 = arith.constant 0 : index
      %c0_13 = arith.constant 0 : index
      %14 = vector.load %arg7[%c0_12, %c0_13] : memref<16x32xf32, #tpu.memory_space<vmem>>, vector<16x32xf32>
      %15 = arith.addf %13, %14 : vector<16x32xf32>
      %16 = arith.truncf %15 : vector<16x32xf32> to vector<16x32xbf16>
      %c0_14 = arith.constant 0 : index
      %c0_15 = arith.constant 0 : index
      %17 = vector.load %arg6[%c0_14, %c0_15] : memref<16x32xbf16, #tpu.memory_space<vmem>>, vector<16x32xbf16>
      tpu.vector_store %arg6[%c0_14, %c0_15], %16 {strides = array<i32>} : memref<16x32xbf16, #tpu.memory_space<vmem>>, vector<16x32xbf16>,
    } else {
    }
    return
  }
  func.func @transform_0(%arg0: i32, %arg1: i32, %arg2: i32) -> (i32, i32) {
    %c0_i32 = arith.constant 0 : i32
    return %arg0, %arg2 : i32, i32
  }
  func.func @transform_1(%arg0: i32, %arg1: i32, %arg2: i32) -> (i32, i32) {
    %c0_i32 = arith.constant 0 : i32
    return %arg2, %arg1 : i32, i32
  }
  func.func @transform_2(%arg0: i32, %arg1: i32, %arg2: i32) -> (i32, i32) {
    %c0_i32 = arith.constant 0 : i32
    return %arg0, %arg1 : i32, i32
  }
  func.func @transform_3(%arg0: i32, %arg1: i32, %arg2: i32) -> (i32, i32) {
    %c0_i32 = arith.constant 0 : i32
    return %arg0, %arg1 : i32, i32
  }
}

module attributes {stable_mosaic.version = 11 : i64} {
  func.func @_rmsnorm_kernel(%arg0: i32, %arg1: memref<1x32xf32, #tpu.memory_space<vmem>>, %arg2: memref<16x32xbf16, #tpu.memory_space<vmem>>, %arg3: memref<16x32xf32, #tpu.memory_space<vmem>>) attributes {dimension_semantics = [#tpu.dimension_semantics<parallel>], iteration_bounds = array<i64: 1>, scalar_prefetch = 0 : i64, scratch_operands = 0 : i64, tpu.core_type = #tpu.core_type<tc>, window_params = [{pipeline_mode = #tpu.pipeline_mode<synchronous>, transform_indices = @transform_0, window_bounds = array<i64: 1, 32>}, {transform_indices = @transform_1, window_bounds = array<i64: 16, 32>}, {transform_indices = @transform_2, window_bounds = array<i64: 16, 32>}]} {
    %c0 = arith.constant 0 : index
    %c0_0 = arith.constant 0 : index
    %0 = vector.load %arg2[%c0, %c0_0] : memref<16x32xbf16, #tpu.memory_space<vmem>>, vector<16x32xbf16>
    %1 = arith.extf %0 : vector<16x32xbf16> to vector<16x32xf32>
    %2 = arith.mulf %1, %1 : vector<16x32xf32>
    %cst = arith.constant dense<0.000000e+00> : vector<16xf32>
    %3 = vector.multi_reduction <add>, %2, %cst [1] : vector<16x32xf32> to vector<16xf32>
    %4 = vector.shape_cast %3 : vector<16xf32> to vector<16x1xf32>
    %cst_1 = arith.constant 3.200000e+01 : f32
    %5 = vector.broadcast %cst_1 : f32 to vector<16x1xf32>
    %6 = arith.divf %4, %5 : vector<16x1xf32>
    %cst_2 = arith.constant 9.99999974E-6 : f32
    %7 = vector.broadcast %cst_2 : f32 to vector<16x1xf32>
    %8 = arith.addf %6, %7 : vector<16x1xf32>
    %9 = math.rsqrt %8 : vector<16x1xf32>
    %10 = vector.broadcast %9 : vector<16x1xf32> to vector<16x32xf32>
    %11 = arith.mulf %1, %10 : vector<16x32xf32>
    %c0_3 = arith.constant 0 : index
    %c0_4 = arith.constant 0 : index
    %12 = vector.load %arg1[%c0_3, %c0_4] : memref<1x32xf32, #tpu.memory_space<vmem>>, vector<1x32xf32>
    %13 = vector.broadcast %12 : vector<1x32xf32> to vector<16x32xf32>
    %14 = arith.mulf %11, %13 : vector<16x32xf32>
    %c0_5 = arith.constant 0 : index
    %c0_6 = arith.constant 0 : index
    %15 = vector.load %arg3[%c0_5, %c0_6] : memref<16x32xf32, #tpu.memory_space<vmem>>, vector<16x32xf32>
    tpu.vector_store %arg3[%c0_5, %c0_6], %14 {strides = array<i32>} : memref<16x32xf32, #tpu.memory_space<vmem>>, vector<16x32xf32>,
    return
  }
  func.func @transform_0(%arg0: i32) -> (i32, i32) {
    %c0_i32 = arith.constant 0 : i32
    %c0_i32_0 = arith.constant 0 : i32
    %c0_i32_1 = arith.constant 0 : i32
    return %c0_i32, %c0_i32_0 : i32, i32
  }
  func.func @transform_1(%arg0: i32) -> (i32, i32) {
    %c0_i32 = arith.constant 0 : i32
    %c0_i32_0 = arith.constant 0 : i32
    return %arg0, %c0_i32 : i32, i32
  }
  func.func @transform_2(%arg0: i32) -> (i32, i32) {
    %c0_i32 = arith.constant 0 : i32
    %c0_i32_0 = arith.constant 0 : i32
    return %arg0, %c0_i32 : i32, i32
  }
}

</mosaic_0001>

<llo_original>
// kernel: swapllama_forward.16
$region0: #{swapllama_forward.16}
  #allocation0 [shape = 'u32[]', space=smem, size = 0x4, offset = 0x4, fixed_abs, tag = 'smem constant byte address 0x4 - core index']
  #allocation1 [shape = 'u32[144,128]{1,0:T(1,128)}', space=vmem, size = 0x12000, scoped, tag = 'internal scratch']
  #allocation2 [shape = 'f32[16,96]{1,0:T(8,128)}', space=vmem, size = 0x2000, scoped, tag = 'scratch operand']
  %s0 = inlined_call_operand.vmem [shape: f32[16,1], index: 0, kind: input, shape index: {}]
  %s1 = inlined_call_operand.vmem [shape: f32[1,32], index: 1, kind: input, shape index: {}]
  %s2 = inlined_call_operand.vmem [shape: bf16[16,32], index: 2, kind: input, shape index: {}]
  %s3 = inlined_call_operand.vmem [shape: bf16[32,96], index: 3, kind: input, shape index: {}]
  %s4 = inlined_call_operand.vmem [shape: bf16[16,96], index: 4, kind: output, shape index: {}]
  %s5 = sld [smem:[#allocation0]]
  $region34: #{swapllama_forward.16} parent=0
    _
  %s7 = ssub.s32 1, %s5
  %s8 = scalar_select 0, %s7, %s5
  // Predicated region
  $region2: #{swapllama_forward.16} parent=0 // pred_check
    _
  $region3: #{swapllama_forward.16} parent=0 // pred_check_branch
    %10 = sbr.rel (0) target = $region5
  $region4: #{swapllama_forward.16} parent=0 // pred_region
    _
  $region5: #{swapllama_forward.16} parent=0 // pred_fallthru
    _
  // Predicated region
  $region6: #{swapllama_forward.16} parent=0 // pred_check
    _
  $region7: #{swapllama_forward.16} parent=0 // pred_check_branch
    %12 = sbr.rel (0) target = $region9
  $region8: #{swapllama_forward.16} parent=0 // pred_region
    _
  $region9: #{swapllama_forward.16} parent=0 // pred_fallthru
    _
  // Predicated region
  $region10: #{swapllama_forward.16} parent=0 // pred_check
    _
  $region11: #{swapllama_forward.16} parent=0 // pred_check_branch
    %14 = sbr.rel (0) target = $region13
  $region12: #{swapllama_forward.16} parent=0 // pred_region
    _
  $region13: #{swapllama_forward.16} parent=0 // pred_fallthru
    _
  // Predicated region
  $region14: #{swapllama_forward.16} parent=0 // pred_check
    _
  $region15: #{swapllama_forward.16} parent=0 // pred_check_branch
    %16 = sbr.rel (0) target = $region17
  $region16: #{swapllama_forward.16} parent=0 // pred_region
    _
  $region17: #{swapllama_forward.16} parent=0 // pred_fallthru
    _
  %p18 = scmp.eq.s32.totalorder 0, 0
  // Predicated region
  $region18: #{swapllama_forward.16} parent=0 // pred_check
    %p19 = pneg %p18
  $region19: #{swapllama_forward.16} parent=0 // pred_check_branch
    %21 = sbr.rel (%p19) target = $region21
  $region20: #{swapllama_forward.16} parent=0 // pred_region
    %vm22 = vcmask 785408
    %23 = vst.msk [vmem:[#allocation2] sm:$0xff] %vm22, 0.0
    %24 = vst.msk [vmem:[#allocation2 + $0x8] sm:$0xff] %vm22, 0.0
  $region21: #{swapllama_forward.16} parent=0 // pred_fallthru
    _
  %v25 = vld [vmem:[%s2] sm:$0xf]
  %v26 = vld [vmem:[%s2 + $0x4] sm:$0xf]
  %v27 = vunpack.c.l.bf16 %v25
  %v28 = vunpack.c.l.bf16 %v26
  %v29 = vld [vmem:[%s0] sm:$0xff]
  %v30 = vld [vmem:[%s0 + $0x8] sm:$0xff]
  %32 = vset.pattern.permute.xlu0 0
  %33 = vperm.xlu0 %32, %v29
  %v34 = vpop.permute.xlu0 %33
  %37 = vset.pattern.permute.xlu0 0
  %38 = vperm.xlu0 %37, %v30
  %v39 = vpop.permute.xlu0 %38
  %v41 = vmul.f32 %v27, %v34
  %v42 = vmul.f32 %v28, %v39
  %v43 = vld [vmem:[%s1] sm:$0x1]
  %v45 = vlaneseq
  %v46 = vshrl.u32 %v45, 7
  %v47 = vsub.s32 0, %v46
  %v48 = vrot.slane %v43, %v47
  %v50 = vmul.f32 %v41, %v48
  %v51 = vmul.f32 %v42, %v48
  %v52 = vld [vmem:[#allocation2] sm:$0xff]
  %v53 = vld [vmem:[#allocation2 + $0x8] sm:$0xff]
  %v54 = vpack.c.bf16 %v51, %v50
  %v55 = vld [vmem:[%s3] sm:$0xf]
  %v56 = vld [vmem:[%s3 + $0x4] sm:$0xf]
  %v57 = vld [vmem:[%s3 + $0x8] sm:$0xf]
  %v58 = vld [vmem:[%s3 + $0xc] sm:$0xf]
  %v63 = vunpack.c.l.b16 %v55
  %v64 = vunpack.c.l.b16 %v56
  %v65 = vunpack.c.l.b16 %v57
  %v66 = vunpack.c.l.b16 %v58
  %v67 = vpack.c.b16 %v64, %v63
  %v68 = vpack.c.b16 %v66, %v65
  %vm71 = vcmask 261120
  %v73 = vsel %vm71, %v54, 0
  %75 = vmatprep.subr.bf16.mxu0 0
  %76 = vmatpush1.bf16.msra.mxu0 %v67
  %77 = vmatprep.subr.bf16.mxu0 0
  %78 = vmatpush1.bf16.msra.mxu0 %v68
  %79 = vmatprep.subr.bf16.mxu0 0
  %80 = vmatpush1.bf16.msra.mxu0 0
  %81 = vmatprep.subr.bf16.mxu0 0
  %82 = vmatpush1.bf16.msra.mxu0 0
  %83 = vmatprep.subr.bf16.mxu0 0
  %84 = vmatpush1.bf16.msra.mxu0 0
  %85 = vmatprep.subr.bf16.mxu0 0
  %86 = vmatpush1.bf16.msra.mxu0 0
  %87 = vmatprep.subr.bf16.mxu0 0
  %88 = vmatpush1.bf16.msra.mxu0 0
  %89 = vmatprep.subr.bf16.mxu0 0
  %90 = vmatpush1.bf16.msra.mxu0 0
  %91 = vmatprep.subr.bf16.mxu0 0
  %92 = vmatpush1.bf16.msra.mxu0 0
  %93 = vmatprep.subr.bf16.mxu0 0
  %94 = vmatpush1.bf16.msra.mxu0 0
  %95 = vmatprep.subr.bf16.mxu0 0
  %96 = vmatpush1.bf16.msra.mxu0 0
  %97 = vmatprep.subr.bf16.mxu0 0
  %98 = vmatpush1.bf16.msra.mxu0 0
  %99 = vmatprep.subr.bf16.mxu0 0
  %100 = vmatpush1.bf16.msra.mxu0 0
  %101 = vmatprep.subr.bf16.mxu0 0
  %102 = vmatpush1.bf16.msra.mxu0 0
  %103 = vmatprep.subr.bf16.mxu0 0
  %104 = vmatpush1.bf16.msra.mxu0 0
  %105 = vmatprep.subr.bf16.mxu0 0
  %106 = vmatpush1.bf16.msra.mxu0 0
  %107 = vmatprep.mubr.bf16.mxu0 0
  %108 = vmatmul.mubr.bf16.gmra.mrb[0].mxu0 %v73
  %v109 = vpop.f32.mrb[0].mxu0
  %v110 = vadd.f32 0.0, %v109
  %v111 = vpop.f32.mrb[0].mxu0
  %v112 = vpop.f32.mrb[0].mxu0
  %v113 = vadd.f32 0.0, %v112
  %v114 = vpop.f32.mrb[0].mxu0
  %115 = vdwg.mxu0
  %v116 = vadd.f32 %v52, %v110
  %v117 = vadd.f32 %v53, %v113
  %vm118 = vcmask 785408
  %119 = vst.msk [vmem:[#allocation2] sm:$0xff] %vm118, %v116
  %120 = vst.msk [vmem:[#allocation2 + $0x8] sm:$0xff] %vm118, %v117
  // Predicated region
  $region22: #{swapllama_forward.16} parent=0 // pred_check
    %p121 = pneg %p18
  $region23: #{swapllama_forward.16} parent=0 // pred_check_branch
    %123 = sbr.rel (%p121) target = $region25
  $region24: #{swapllama_forward.16} parent=0 // pred_region
    %v124 = vld [vmem:[#allocation2] sm:$0xff]
    %v125 = vld [vmem:[#allocation2 + $0x8] sm:$0xff]
    %v126 = vpack.c.bf16 %v125, %v124
    %v128 = vunpack.c.l.b16 %v126
    %v129 = vunpack.c.h.b16 %v126
    %v130 = vpack.c.b16 %v128, %v128
    %v131 = vpack.c.b16 %v129, %v129
    %vm134 = vcmask 781312
    %135 = vst.msk [vmem:[%s4] sm:$0xf] %vm134, %v130
    %136 = vst.msk [vmem:[%s4 + $0x4] sm:$0xf] %vm134, %v131
  $region25: #{swapllama_forward.16} parent=0 // pred_fallthru
    _
  // Predicated region
  $region26: #{swapllama_forward.16} parent=0 // pred_check
    _
  $region27: #{swapllama_forward.16} parent=0 // pred_check_branch
    %138 = sbr.rel (0) target = $region29
  $region28: #{swapllama_forward.16} parent=0 // pred_region
    _
  $region29: #{swapllama_forward.16} parent=0 // pred_fallthru
    _
  // Predicated region
  $region30: #{swapllama_forward.16} parent=0 // pred_check
    _
  $region31: #{swapllama_forward.16} parent=0 // pred_check_branch
    %140 = sbr.rel (0) target = $region33
  $region32: #{swapllama_forward.16} parent=0 // pred_region
    _
  $region33: #{swapllama_forward.16} parent=0 // pred_fallthru
    _

// kernel: swapllama_forward.15
$region0: #{swapllama_forward.15}
  #allocation0 [shape = 'u32[]', space=smem, size = 0x4, offset = 0x4, fixed_abs, tag = 'smem constant byte address 0x4 - core index']
  #allocation1 [shape = 'u32[144,128]{1,0:T(1,128)}', space=vmem, size = 0x12000, scoped, tag = 'internal scratch']
  %s0 = inlined_call_operand.vmem [shape: bf16[16,32], index: 0, kind: input, shape index: {}]
  %s1 = inlined_call_operand.vmem [shape: f32[16,1], index: 1, kind: output, shape index: {}]
  %s2 = sld [smem:[#allocation0]]
  $region14: #{swapllama_forward.15} parent=0
    _
  %s4 = ssub.s32 1, %s2
  %s5 = scalar_select 0, %s4, %s2
  // Predicated region
  $region2: #{swapllama_forward.15} parent=0 // pred_check
    _
  $region3: #{swapllama_forward.15} parent=0 // pred_check_branch
    %7 = sbr.rel (0) target = $region5
  $region4: #{swapllama_forward.15} parent=0 // pred_region
    _
  $region5: #{swapllama_forward.15} parent=0 // pred_fallthru
    _
  %v8 = vld [vmem:[%s0] sm:$0xf]
  %v9 = vld [vmem:[%s0 + $0x4] sm:$0xf]
  %v10 = vunpack.c.l.bf16 %v8
  %v11 = vunpack.c.l.bf16 %v9
  %v12 = vmul.f32 %v10, %v10
  %v13 = vmul.f32 %v11, %v11
  %vm14 = vcmask 261120
  %v15 = vsel %vm14, %v12, 0.0
  %16 = vadd.xlane.f32.xlu0 %v15
  %v17 = vpop.xlane.xlu0 %16
  %v18 = vsel %vm14, %v13, 0.0
  %19 = vadd.xlane.f32.xlu0 %v18
  %v20 = vpop.xlane.xlu0 %19
  %v21 = vrcp.pop 32.0
  %v22 = vmul.f32 %v17, %v21
  %v23 = vmul.f32 %v20, %v21
  %v24 = vadd.f32 %v22, 1e-05
  %v25 = vadd.f32 %v23, 1e-05
  %v26 = vrsqrt.pop %v24
  %v27 = vrsqrt.pop %v25
  %vm28 = vcmask 7168
  %29 = vst.msk [vmem:[%s1] sm:$0xff] %vm28, %v26
  %30 = vst.msk [vmem:[%s1 + $0x8] sm:$0xff] %vm28, %v27
  // Predicated region
  $region6: #{swapllama_forward.15} parent=0 // pred_check
    _
  $region7: #{swapllama_forward.15} parent=0 // pred_check_branch
    %32 = sbr.rel (0) target = $region9
  $region8: #{swapllama_forward.15} parent=0 // pred_region
    _
  $region9: #{swapllama_forward.15} parent=0 // pred_fallthru
    _
  // Predicated region
  $region10: #{swapllama_forward.15} parent=0 // pred_check
    _
  $region11: #{swapllama_forward.15} parent=0 // pred_check_branch
    %34 = sbr.rel (0) target = $region13
  $region12: #{swapllama_forward.15} parent=0 // pred_region
    _
  $region13: #{swapllama_forward.15} parent=0 // pred_fallthru
    _

// kernel: swapllama_forward.18
$region0: #{swapllama_forward.18}
  #allocation0 [shape = 'u32[]', space=smem, size = 0x4, offset = 0x4, fixed_abs, tag = 'smem constant byte address 0x4 - core index']
  #allocation1 [shape = 'u32[144,128]{1,0:T(1,128)}', space=vmem, size = 0x12000, scoped, tag = 'internal scratch']
  #allocation2 [shape = 'f32[16,32]{1,0:T(8,128)}', space=vmem, size = 0x2000, scoped, tag = 'scratch operand']
  %s0 = inlined_call_operand.vmem [shape: bf16[16,32], index: 0, kind: input, shape index: {}]
  %s1 = inlined_call_operand.vmem [shape: bf16[32,32], index: 1, kind: input, shape index: {}]
  %s2 = inlined_call_operand.vmem [shape: bf16[16,32], index: 2, kind: input, shape index: {}]
  %s3 = inlined_call_operand.vmem [shape: bf16[16,32], index: 3, kind: output, shape index: {}]
  %s4 = sld [smem:[#allocation0]]
  $region30: #{swapllama_forward.18} parent=0
    _
  %s6 = ssub.s32 1, %s4
  %s7 = scalar_select 0, %s6, %s4
  // Predicated region
  $region2: #{swapllama_forward.18} parent=0 // pred_check
    _
  $region3: #{swapllama_forward.18} parent=0 // pred_check_branch
    %9 = sbr.rel (0) target = $region5
  $region4: #{swapllama_forward.18} parent=0 // pred_region
    _
  $region5: #{swapllama_forward.18} parent=0 // pred_fallthru
    _
  // Predicated region
  $region6: #{swapllama_forward.18} parent=0 // pred_check
    _
  $region7: #{swapllama_forward.18} parent=0 // pred_check_branch
    %11 = sbr.rel (0) target = $region9
  $region8: #{swapllama_forward.18} parent=0 // pred_region
    _
  $region9: #{swapllama_forward.18} parent=0 // pred_fallthru
    _
  // Predicated region
  $region10: #{swapllama_forward.18} parent=0 // pred_check
    _
  $region11: #{swapllama_forward.18} parent=0 // pred_check_branch
    %13 = sbr.rel (0) target = $region13
  $region12: #{swapllama_forward.18} parent=0 // pred_region
    _
  $region13: #{swapllama_forward.18} parent=0 // pred_fallthru
    _
  %p15 = scmp.eq.s32.totalorder 0, 0
  // Predicated region
  $region14: #{swapllama_forward.18} parent=0 // pred_check
    %p16 = pneg %p15
  $region15: #{swapllama_forward.18} parent=0 // pred_check_branch
    %18 = sbr.rel (%p16) target = $region17
  $region16: #{swapllama_forward.18} parent=0 // pred_region
    %vm19 = vcmask 261120
    %20 = vst.msk [vmem:[#allocation2] sm:$0xff] %vm19, 0.0
    %21 = vst.msk [vmem:[#allocation2 + $0x8] sm:$0xff] %vm19, 0.0
  $region17: #{swapllama_forward.18} parent=0 // pred_fallthru
    _
  %v22 = vld [vmem:[#allocation2] sm:$0xff]
  %v23 = vld [vmem:[#allocation2 + $0x8] sm:$0xff]
  %v24 = vld [vmem:[%s0] sm:$0xf]
  %v25 = vld [vmem:[%s0 + $0x4] sm:$0xf]
  %v26 = vld [vmem:[%s1] sm:$0xf]
  %v27 = vld [vmem:[%s1 + $0x4] sm:$0xf]
  %v28 = vld [vmem:[%s1 + $0x8] sm:$0xf]
  %v29 = vld [vmem:[%s1 + $0xc] sm:$0xf]
  %v32 = vunpack.c.l.b16 %v24
  %v33 = vunpack.c.l.b16 %v25
  %v34 = vpack.c.b16 %v33, %v32
  %v39 = vunpack.c.l.b16 %v26
  %v40 = vunpack.c.l.b16 %v27
  %v41 = vunpack.c.l.b16 %v28
  %v42 = vunpack.c.l.b16 %v29
  %v43 = vpack.c.b16 %v40, %v39
  %v44 = vpack.c.b16 %v42, %v41
  %vm47 = vcmask 261120
  %v49 = vsel %vm47, %v34, 0
  %51 = vmatprep.subr.bf16.mxu0 0
  %52 = vmatpush1.bf16.msra.mxu0 %v43
  %53 = vmatprep.subr.bf16.mxu0 0
  %54 = vmatpush1.bf16.msra.mxu0 %v44
  %55 = vmatprep.subr.bf16.mxu0 0
  %56 = vmatpush1.bf16.msra.mxu0 0
  %57 = vmatprep.subr.bf16.mxu0 0
  %58 = vmatpush1.bf16.msra.mxu0 0
  %59 = vmatprep.subr.bf16.mxu0 0
  %60 = vmatpush1.bf16.msra.mxu0 0
  %61 = vmatprep.subr.bf16.mxu0 0
  %62 = vmatpush1.bf16.msra.mxu0 0
  %63 = vmatprep.subr.bf16.mxu0 0
  %64 = vmatpush1.bf16.msra.mxu0 0
  %65 = vmatprep.subr.bf16.mxu0 0
  %66 = vmatpush1.bf16.msra.mxu0 0
  %67 = vmatprep.subr.bf16.mxu0 0
  %68 = vmatpush1.bf16.msra.mxu0 0
  %69 = vmatprep.subr.bf16.mxu0 0
  %70 = vmatpush1.bf16.msra.mxu0 0
  %71 = vmatprep.subr.bf16.mxu0 0
  %72 = vmatpush1.bf16.msra.mxu0 0
  %73 = vmatprep.subr.bf16.mxu0 0
  %74 = vmatpush1.bf16.msra.mxu0 0
  %75 = vmatprep.subr.bf16.mxu0 0
  %76 = vmatpush1.bf16.msra.mxu0 0
  %77 = vmatprep.subr.bf16.mxu0 0
  %78 = vmatpush1.bf16.msra.mxu0 0
  %79 = vmatprep.subr.bf16.mxu0 0
  %80 = vmatpush1.bf16.msra.mxu0 0
  %81 = vmatprep.subr.bf16.mxu0 0
  %82 = vmatpush1.bf16.msra.mxu0 0
  %83 = vmatprep.mubr.bf16.mxu0 0
  %84 = vmatmul.mubr.bf16.gmra.mrb[0].mxu0 %v49
  %v85 = vpop.f32.mrb[0].mxu0
  %v86 = vadd.f32 0.0, %v85
  %v87 = vpop.f32.mrb[0].mxu0
  %v88 = vpop.f32.mrb[0].mxu0
  %v89 = vadd.f32 0.0, %v88
  %v90 = vpop.f32.mrb[0].mxu0
  %91 = vdwg.mxu0
  %v92 = vadd.f32 %v22, %v86
  %v93 = vadd.f32 %v23, %v89
  %94 = vst.msk [vmem:[#allocation2] sm:$0xff] %vm47, %v92
  %95 = vst.msk [vmem:[#allocation2 + $0x8] sm:$0xff] %vm47, %v93
  // Predicated region
  $region18: #{swapllama_forward.18} parent=0 // pred_check
    %p96 = pneg %p15
  $region19: #{swapllama_forward.18} parent=0 // pred_check_branch
    %98 = sbr.rel (%p96) target = $region21
  $region20: #{swapllama_forward.18} parent=0 // pred_region
    %v99 = vld [vmem:[%s2] sm:$0xf]
    %v100 = vld [vmem:[%s2 + $0x4] sm:$0xf]
    %v101 = vunpack.c.l.bf16 %v99
    %v102 = vunpack.c.l.bf16 %v100
    %v103 = vld [vmem:[#allocation2] sm:$0xff]
    %v104 = vld [vmem:[#allocation2 + $0x8] sm:$0xff]
    %v105 = vadd.f32 %v101, %v103
    %v106 = vadd.f32 %v102, %v104
    %v107 = vpack.c.bf16 %v106, %v105
    %v109 = vunpack.c.l.b16 %v107
    %v110 = vunpack.c.h.b16 %v107
    %v111 = vpack.c.b16 %v109, %v109
    %v112 = vpack.c.b16 %v110, %v110
    %vm115 = vcmask 257024
    %116 = vst.msk [vmem:[%s3] sm:$0xf] %vm115, %v111
    %117 = vst.msk [vmem:[%s3 + $0x4] sm:$0xf] %vm115, %v112
  $region21: #{swapllama_forward.18} parent=0 // pred_fallthru
    _
  // Predicated region
  $region22: #{swapllama_forward.18} parent=0 // pred_check
    _
  $region23: #{swapllama_forward.18} parent=0 // pred_check_branch
    %119 = sbr.rel (0) target = $region25
  $region24: #{swapllama_forward.18} parent=0 // pred_region
    _
  $region25: #{swapllama_forward.18} parent=0 // pred_fallthru
    _
  // Predicated region
  $region26: #{swapllama_forward.18} parent=0 // pred_check
    _
  $region27: #{swapllama_forward.18} parent=0 // pred_check_branch
    %121 = sbr.rel (0) target = $region29
  $region28: #{swapllama_forward.18} parent=0 // pred_region
    _
  $region29: #{swapllama_forward.18} parent=0 // pred_fallthru
    _

// kernel: swapllama_forward.17
$region0: #{swapllama_forward.17}
  #allocation0 [shape = 'u32[]', space=smem, size = 0x4, offset = 0x4, fixed_abs, tag = 'smem constant byte address 0x4 - core index']
  #allocation1 [shape = 'u32[144,128]{1,0:T(1,128)}', space=vmem, size = 0x12000, scoped, tag = 'internal scratch']
  #allocation2 [shape = 'f32[8,1]{1,0:T(8,128)}', space=vmem, size = 0x1000, scoped, tag = 'scratch operand']
  #allocation3 [shape = 'f32[8,1]{1,0:T(8,128)}', space=vmem, size = 0x1000, scoped, tag = 'scratch operand']
  #allocation4 [shape = 'f32[8,8]{1,0:T(8,128)}', space=vmem, size = 0x1000, scoped, tag = 'scratch operand']
  %s0 = inlined_call_operand.vmem [shape: bf16[8,8,8], index: 0, kind: input, shape index: {}]
  %s1 = inlined_call_operand.vmem [shape: bf16[8,8,8], index: 1, kind: input, shape index: {}]
  %s2 = inlined_call_operand.vmem [shape: bf16[8,8,8], index: 2, kind: input, shape index: {}]
  %s3 = inlined_call_operand.vmem [shape: f32[8,8], index: 3, kind: input, shape index: {}]
  %s4 = inlined_call_operand.vmem [shape: bf16[8,8,8], index: 4, kind: output, shape index: {}]
  %s5 = sld [smem:[#allocation0]]
  $region57: #{swapllama_forward.17} parent=0
    _
  %s7 = ssub.s32 1, %s5
  %s8 = scalar_select 0, %s7, %s5
  loop: start=0, step=1, limit=10
  $region2: #{swapllama_forward.17} parent=0 // loop_pre_header
    _
  $region3: #{swapllama_forward.17} parent=0 // loop_header
    %s10 = sphi 0, %s14
    %p11 = scmp.ge.s32.totalorder %s10, 10
    %s17 = sphi 0, %s36
    %s18 = sphi 0, %s32
    %s19 = sphi 0, %s28
    %s20 = sphi 0, %s17
    %s21 = sphi 0, %s18
    %s22 = sphi 0, %s19
    %s23 = sphi 0, %s20
    %s24 = sphi 0, %s21
    %s25 = sphi 0, %s22
    %s41 = sphi 0, %s43
    %s44 = sphi 0, %s41
    %s45 = sphi 0, %s44
    %s61 = sphi 0, %s45
    %s69 = sphi 0, %s71
    %s72 = sphi 0, %s69
    %s73 = sphi 0, %s72
    %s89 = sphi 0, %s73
    %s97 = sphi 0, %s99
    %s100 = sphi 0, %s97
    %s101 = sphi 0, %s100
    %s117 = sphi 0, %s101
    %s125 = sphi 0, %s127
    %s128 = sphi 0, %s125
    %s129 = sphi 0, %s128
    %s145 = sphi 0, %s129
    %s153 = sphi 0, %s155
    %s156 = sphi 0, %s153
    %s157 = sphi 0, %s156
    %s173 = sphi 0, %s157
  $region4: #{swapllama_forward.17} parent=0 // loop_header_branch
    %13 = sbr.rel (%p11) target = $region8
  $region5: #{swapllama_forward.17} parent=0 // loop_body
    %s15 = ssub.s32 %s10, 1
    %s16 = ssub.s32 %s10, 2
    %s26 = sadd.s32 1, %s19
    %p27 = scmp.ge.s32.totalorder %s26, 1
    %s28 = scalar_select %p27, 0, %s26
    %s29 = sadd.s32 1, %s18
    %s30 = scalar_select %p27, %s29, %s18
    %p31 = scmp.ge.s32.totalorder %s30, 1
    %s32 = scalar_select %p31, 0, %s30
    %s33 = sadd.s32 1, %s17
    %s34 = scalar_select %p31, %s33, %s17
    %p35 = scmp.ge.s32.totalorder %s34, 8
    %s36 = scalar_select %p35, 0, %s34
    %s37 = ssub.s32 %s17, %s36
    %s38 = ssub.s32 %s18, %s32
    %s39 = sor.u32 %s37, %s38
    %p40 = scmp.eq.s32.totalorder %s39, 0
    %s42 = sadd.s32 %s41, 1
    %s43 = scalar_select %p40, %s41, %s42
    %p46 = pneg %p40
    %p47 = scmp.eq.s32.totalorder %s10, 7
    %p48 = por %p46, %p47
    %p49 = scmp.ne.s32.totalorder %s41, %s44
    %p50 = scmp.eq.s32.totalorder %s10, 0
    %p51 = por %p49, %p50
    %p52 = scmp.ne.s32.totalorder %s41, %s44
    %p53 = scmp.eq.s32.totalorder %s15, 7
    %p54 = por %p52, %p53
    %p55 = scmp.ne.s32.totalorder %s44, %s45
    %p56 = scmp.eq.s32.totalorder %s15, 0
    %p57 = por %p55, %p56
    %p58 = scmp.ne.s32.totalorder %s44, %s45
    %p59 = scmp.eq.s32.totalorder %s16, 7
    %p60 = por %p58, %p59
    %p62 = scmp.ne.s32.totalorder %s45, %s61
    %p63 = scmp.eq.s32.totalorder %s16, 0
    %p64 = por %p62, %p63
    %s65 = ssub.s32 %s17, %s36
    %s66 = ssub.s32 %s19, %s28
    %s67 = sor.u32 %s65, %s66
    %p68 = scmp.eq.s32.totalorder %s67, 0
    %s70 = sadd.s32 %s69, 1
    %s71 = scalar_select %p68, %s69, %s70
    %p74 = pneg %p68
    %p75 = scmp.eq.s32.totalorder %s10, 7
    %p76 = por %p74, %p75
    %p77 = scmp.ne.s32.totalorder %s69, %s72
    %p78 = scmp.eq.s32.totalorder %s10, 0
    %p79 = por %p77, %p78
    %p80 = scmp.ne.s32.totalorder %s69, %s72
    %p81 = scmp.eq.s32.totalorder %s15, 7
    %p82 = por %p80, %p81
    %p83 = scmp.ne.s32.totalorder %s72, %s73
    %p84 = scmp.eq.s32.totalorder %s15, 0
    %p85 = por %p83, %p84
    %p86 = scmp.ne.s32.totalorder %s72, %s73
    %p87 = scmp.eq.s32.totalorder %s16, 7
    %p88 = por %p86, %p87
    %p90 = scmp.ne.s32.totalorder %s73, %s89
    %p91 = scmp.eq.s32.totalorder %s16, 0
    %p92 = por %p90, %p91
    %s93 = ssub.s32 %s17, %s36
    %s94 = ssub.s32 %s19, %s28
    %s95 = sor.u32 %s93, %s94
    %p96 = scmp.eq.s32.totalorder %s95, 0
    %s98 = sadd.s32 %s97, 1
    %s99 = scalar_select %p96, %s97, %s98
    %p102 = pneg %p96
    %p103 = scmp.eq.s32.totalorder %s10, 7
    %p104 = por %p102, %p103
    %p105 = scmp.ne.s32.totalorder %s97, %s100
    %p106 = scmp.eq.s32.totalorder %s10, 0
    %p107 = por %p105, %p106
    %p108 = scmp.ne.s32.totalorder %s97, %s100
    %p109 = scmp.eq.s32.totalorder %s15, 7
    %p110 = por %p108, %p109
    %p111 = scmp.ne.s32.totalorder %s100, %s101
    %p112 = scmp.eq.s32.totalorder %s15, 0
    %p113 = por %p111, %p112
    %p114 = scmp.ne.s32.totalorder %s100, %s101
    %p115 = scmp.eq.s32.totalorder %s16, 7
    %p116 = por %p114, %p115
    %p118 = scmp.ne.s32.totalorder %s101, %s117
    %p119 = scmp.eq.s32.totalorder %s16, 0
    %p120 = por %p118, %p119
    %s121 = ssub.s32 %s18, %s32
    %s122 = ssub.s32 %s19, %s28
    %s123 = sor.u32 %s121, %s122
    %p124 = scmp.eq.s32.totalorder %s123, 0
    %s126 = sadd.s32 %s125, 1
    %s127 = scalar_select %p124, %s125, %s126
    %p130 = pneg %p124
    %p131 = scmp.eq.s32.totalorder %s10, 7
    %p132 = por %p130, %p131
    %p133 = scmp.ne.s32.totalorder %s125, %s128
    %p134 = scmp.eq.s32.totalorder %s10, 0
    %p135 = por %p133, %p134
    %p136 = scmp.ne.s32.totalorder %s125, %s128
    %p137 = scmp.eq.s32.totalorder %s15, 7
    %p138 = por %p136, %p137
    %p139 = scmp.ne.s32.totalorder %s128, %s129
    %p140 = scmp.eq.s32.totalorder %s15, 0
    %p141 = por %p139, %p140
    %p142 = scmp.ne.s32.totalorder %s128, %s129
    %p143 = scmp.eq.s32.totalorder %s16, 7
    %p144 = por %p142, %p143
    %p146 = scmp.ne.s32.totalorder %s129, %s145
    %p147 = scmp.eq.s32.totalorder %s16, 0
    %p148 = por %p146, %p147
    %s149 = ssub.s32 %s17, %s36
    %s150 = ssub.s32 %s18, %s32
    %s151 = sor.u32 %s149, %s150
    %p152 = scmp.eq.s32.totalorder %s151, 0
    %s154 = sadd.s32 %s153, 1
    %s155 = scalar_select %p152, %s153, %s154
    %p158 = pneg %p152
    %p159 = scmp.eq.s32.totalorder %s10, 7
    %p160 = por %p158, %p159
    %p161 = scmp.ne.s32.totalorder %s153, %s156
    %p162 = scmp.eq.s32.totalorder %s10, 0
    %p163 = por %p161, %p162
    %p164 = scmp.ne.s32.totalorder %s153, %s156
    %p165 = scmp.eq.s32.totalorder %s15, 7
    %p166 = por %p164, %p165
    %p167 = scmp.ne.s32.totalorder %s156, %s157
    %p168 = scmp.eq.s32.totalorder %s15, 0
    %p169 = por %p167, %p168
    %p170 = scmp.ne.s32.totalorder %s156, %s157
    %p171 = scmp.eq.s32.totalorder %s16, 7
    %p172 = por %p170, %p171
    %p174 = scmp.ne.s32.totalorder %s157, %s173
    %p175 = scmp.eq.s32.totalorder %s16, 0
    %p176 = por %p174, %p175
    %p177 = scmp.le.s32.totalorder 1, %s10
    %p178 = scmp.lt.s32.totalorder %s10, 9
    %p179 = pnand %p177, %p178
    %p180 = pneg %p179
    // Predicated region
    $region9: #{swapllama_forward.17} parent=5 // pred_check
      _
    $region10: #{swapllama_forward.17} parent=5 // pred_check_branch
      %182 = sbr.rel (%p179) target = $region12
    $region11: #{swapllama_forward.17} parent=5 // pred_region
      %s183 = ssub.s32 %s10, 1
      // Predicated region
      $region13: #{swapllama_forward.17} parent=11 // pred_check
        %p184 = pneg %p141
      $region14: #{swapllama_forward.17} parent=11 // pred_check_branch
        %186 = sbr.rel (%p184) target = $region16
      $region15: #{swapllama_forward.17} parent=11 // pred_region
        %p187 = scmp.lt.s32.totalorder %s21, 0
        %s188 = scalar_select %p187, %s21, 0
        %p189 = scmp.lt.s32.totalorder %s22, 0
        %s190 = scalar_select %p189, %s22, 0
        %s191 = sadd.s32 %s190, %s188
        %s192 = smul.addr %s191, 8
        %s193 = scalar_lea.vmem %s3, %s192
      $region16: #{swapllama_forward.17} parent=11 // pred_fallthru
        _
    $region12: #{swapllama_forward.17} parent=5 // pred_fallthru
      _
    %p194 = scmp.lt.s32.totalorder %s10, 8
    // Predicated region
    $region17: #{swapllama_forward.17} parent=5 // pred_check
      %p195 = pneg %p194
    $region18: #{swapllama_forward.17} parent=5 // pred_check_branch
      %197 = sbr.rel (%p195) target = $region20
    $region19: #{swapllama_forward.17} parent=5 // pred_region
      // Predicated region
      $region21: #{swapllama_forward.17} parent=19 // pred_check
        %p198 = pneg %p51
      $region22: #{swapllama_forward.17} parent=19 // pred_check_branch
        %200 = sbr.rel (%p198) target = $region24
      $region23: #{swapllama_forward.17} parent=19 // pred_region
        %p201 = scmp.lt.s32.totalorder %s17, 7
        %s202 = scalar_select %p201, %s17, 7
        %p203 = scmp.lt.s32.totalorder %s18, 0
        %s204 = scalar_select %p203, %s18, 0
        %s205 = sadd.s32 %s204, %s202
        %s206 = smul.addr %s205, 4
        %s207 = scalar_lea.vmem %s0, %s206
      $region24: #{swapllama_forward.17} parent=19 // pred_fallthru
        _
      // Predicated region
      $region25: #{swapllama_forward.17} parent=19 // pred_check
        %p208 = pneg %p79
      $region26: #{swapllama_forward.17} parent=19 // pred_check_branch
        %210 = sbr.rel (%p208) target = $region28
      $region27: #{swapllama_forward.17} parent=19 // pred_region
        %p211 = scmp.lt.s32.totalorder %s17, 7
        %s212 = scalar_select %p211, %s17, 7
        %p213 = scmp.lt.s32.totalorder %s19, 0
        %s214 = scalar_select %p213, %s19, 0
        %s215 = sadd.s32 %s214, %s212
        %s216 = smul.addr %s215, 4
        %s217 = scalar_lea.vmem %s1, %s216
      $region28: #{swapllama_forward.17} parent=19 // pred_fallthru
        _
      // Predicated region
      $region29: #{swapllama_forward.17} parent=19 // pred_check
        %p218 = pneg %p107
      $region30: #{swapllama_forward.17} parent=19 // pred_check_branch
        %220 = sbr.rel (%p218) target = $region32
      $region31: #{swapllama_forward.17} parent=19 // pred_region
        %p221 = scmp.lt.s32.totalorder %s17, 7
        %s222 = scalar_select %p221, %s17, 7
        %p223 = scmp.lt.s32.totalorder %s19, 0
        %s224 = scalar_select %p223, %s19, 0
        %s225 = sadd.s32 %s224, %s222
        %s226 = smul.addr %s225, 4
        %s227 = scalar_lea.vmem %s2, %s226
      $region32: #{swapllama_forward.17} parent=19 // pred_fallthru
        _
    $region20: #{swapllama_forward.17} parent=5 // pred_fallthru
      _
    %p228 = scmp.le.s32.totalorder 1, %s10
    %p229 = scmp.lt.s32.totalorder %s10, 9
    %p230 = pnand %p228, %p229
    %p231 = pneg %p230
    // Predicated region
    $region33: #{swapllama_forward.17} parent=5 // pred_check
      _
    $region34: #{swapllama_forward.17} parent=5 // pred_check_branch
      %233 = sbr.rel (%p230) target = $region36
    $region35: #{swapllama_forward.17} parent=5 // pred_region
      %s234 = ssub.s32 %s10, 1
      %p235 = scmp.lt.s32.totalorder %s20, 7
      %s236 = scalar_select %p235, %s20, 7
      %p237 = scmp.lt.s32.totalorder %s21, 0
      %s238 = scalar_select %p237, %s21, 0
      %s239 = sadd.s32 %s238, %s236
      %s240 = smul.addr %s239, 4
      %s241 = scalar_lea.vmem %s0, %s240
      %p242 = pneg %p57
      %p243 = pneg %p54
      %p244 = scmp.lt.s32.totalorder %s20, 7
      %s245 = scalar_select %p244, %s20, 7
      %p246 = scmp.lt.s32.totalorder %s22, 0
      %s247 = scalar_select %p246, %s22, 0
      %s248 = sadd.s32 %s247, %s245
      %s249 = smul.addr %s248, 4
      %s250 = scalar_lea.vmem %s1, %s249
      %p251 = pneg %p85
      %p252 = pneg %p82
      %p253 = scmp.lt.s32.totalorder %s20, 7
      %s254 = scalar_select %p253, %s20, 7
      %p255 = scmp.lt.s32.totalorder %s22, 0
      %s256 = scalar_select %p255, %s22, 0
      %s257 = sadd.s32 %s256, %s254
      %s258 = smul.addr %s257, 4
      %s259 = scalar_lea.vmem %s2, %s258
      %p260 = pneg %p113
      %p261 = pneg %p110
      %p262 = scmp.lt.s32.totalorder %s21, 0
      %s263 = scalar_select %p262, %s21, 0
      %p264 = scmp.lt.s32.totalorder %s22, 0
      %s265 = scalar_select %p264, %s22, 0
      %s266 = sadd.s32 %s265, %s263
      %s267 = smul.addr %s266, 8
      %s268 = scalar_lea.vmem %s3, %s267
      %p269 = pneg %p141
      %p270 = pneg %p138
      %p271 = pneg %p169
      %p272 = pneg %p166
      %p273 = scmp.lt.s32.totalorder %s20, 7
      %s274 = scalar_select %p273, %s20, 7
      %p275 = scmp.lt.s32.totalorder %s21, 0
      %s276 = scalar_select %p275, %s21, 0
      %s277 = sadd.s32 %s276, %s274
      %s278 = smul.addr %s277, 4
      %s279 = scalar_lea.vmem %s4, %s278
      %p280 = scmp.lt.s32.totalorder %s20, 7
      %s281 = scalar_select %p280, %s20, 7
      %p282 = scmp.lt.s32.totalorder %s21, 0
      %s283 = scalar_select %p282, %s21, 0
      %s284 = sadd.s32 %s283, %s281
      %s285 = smul.addr %s284, 4
      %s286 = scalar_lea.vmem %s0, %s285
      %p287 = scmp.lt.s32.totalorder %s20, 7
      %s288 = scalar_select %p287, %s20, 7
      %p289 = scmp.lt.s32.totalorder %s22, 0
      %s290 = scalar_select %p289, %s22, 0
      %s291 = sadd.s32 %s290, %s288
      %s292 = smul.addr %s291, 4
      %s293 = scalar_lea.vmem %s1, %s292
      %p294 = scmp.lt.s32.totalorder %s20, 7
      %s295 = scalar_select %p294, %s20, 7
      %p296 = scmp.lt.s32.totalorder %s22, 0
      %s297 = scalar_select %p296, %s22, 0
      %s298 = sadd.s32 %s297, %s295
      %s299 = smul.addr %s298, 4
      %s300 = scalar_lea.vmem %s2, %s299
      %p301 = scmp.lt.s32.totalorder %s21, 0
      %s302 = scalar_select %p301, %s21, 0
      %p303 = scmp.lt.s32.totalorder %s22, 0
      %s304 = scalar_select %p303, %s22, 0
      %s305 = sadd.s32 %s304, %s302
      %s306 = smul.addr %s305, 8
      %s307 = scalar_lea.vmem %s3, %s306
      %p308 = scmp.lt.s32.totalorder %s20, 7
      %s309 = scalar_select %p308, %s20, 7
      %p310 = scmp.lt.s32.totalorder %s21, 0
      %s311 = scalar_select %p310, %s21, 0
      %s312 = sadd.s32 %s311, %s309
      %s313 = smul.addr %s312, 4
      %s314 = scalar_lea.vmem %s4, %s313
      %p316 = scmp.eq.s32.totalorder %s22, 0
      // Predicated region
      $region37: #{swapllama_forward.17} parent=35 // pred_check
        %p317 = pneg %p316
      $region38: #{swapllama_forward.17} parent=35 // pred_check_branch
        %319 = sbr.rel (%p317) target = $region40
      $region39: #{swapllama_forward.17} parent=35 // pred_region
        %vm320 = vcmask 7168
        %321 = vst.msk [vmem:[#allocation2] sm:$0xff] %vm320, -1e+30
        %322 = vst.msk [vmem:[#allocation3] sm:$0xff] %vm320, 0.0
        %vm323 = vcmask 64512
        %324 = vst.msk [vmem:[#allocation4] sm:$0xff] %vm323, 0.0
      $region40: #{swapllama_forward.17} parent=35 // pred_fallthru
        _
      %v325 = vld [vmem:[%s286] sm:$0xf]
      %v326 = vld [vmem:[%s293] sm:$0xf]
      %v327 = vld [vmem:[%s300] sm:$0xf]
      %vm328 = vcmask 64512
      %v330 = vsel %vm328, %v325, 0
      %v333 = vsel %vm328, %v326, 0
      %335 = vmatprep.subr.bf16.mxu0 0
      %336 = vmatpush1.bf16.xpose.msra.mxu0 %v333
      %337 = vmatprep.subr.bf16.mxu0 0
      %338 = vmatpush1.bf16.xpose.msra.mxu0 0
      %339 = vmatprep.subr.bf16.mxu0 0
      %340 = vmatpush1.bf16.xpose.msra.mxu0 0
      %341 = vmatprep.subr.bf16.mxu0 0
      %342 = vmatpush1.bf16.xpose.msra.mxu0 0
      %343 = vmatprep.subr.bf16.mxu0 0
      %344 = vmatpush1.bf16.xpose.msra.mxu0 0
      %345 = vmatprep.subr.bf16.mxu0 0
      %346 = vmatpush1.bf16.xpose.msra.mxu0 0
      %347 = vmatprep.subr.bf16.mxu0 0
      %348 = vmatpush1.bf16.xpose.msra.mxu0 0
      %349 = vmatprep.subr.bf16.mxu0 0
      %350 = vmatpush1.bf16.xpose.msra.mxu0 0
      %351 = vmatprep.subr.bf16.mxu0 0
      %352 = vmatpush1.bf16.xpose.msra.mxu0 0
      %353 = vmatprep.subr.bf16.mxu0 0
      %354 = vmatpush1.bf16.xpose.msra.mxu0 0
      %355 = vmatprep.subr.bf16.mxu0 0
      %356 = vmatpush1.bf16.xpose.msra.mxu0 0
      %357 = vmatprep.subr.bf16.mxu0 0
      %358 = vmatpush1.bf16.xpose.msra.mxu0 0
      %359 = vmatprep.subr.bf16.mxu0 0
      %360 = vmatpush1.bf16.xpose.msra.mxu0 0
      %361 = vmatprep.subr.bf16.mxu0 0
      %362 = vmatpush1.bf16.xpose.msra.mxu0 0
      %363 = vmatprep.subr.bf16.mxu0 0
      %364 = vmatpush1.bf16.xpose.msra.mxu0 0
      %365 = vmatprep.subr.bf16.mxu0 0
      %366 = vmatpush1.bf16.xpose.msra.mxu0 0
      %367 = vmatprep.mubr.bf16.mxu0 0
      %368 = vmatmul.mubr.bf16.gmra.mrb[0].mxu0 %v330
      %v369 = vpop.f32.mrb[0].mxu0
      %v370 = vadd.f32 0.0, %v369
      %v371 = vpop.f32.mrb[0].mxu0
      %v372 = vpop.f32.mrb[0].mxu0
      %v373 = vpop.f32.mrb[0].mxu0
      %374 = vdwg.mxu0
      %v375 = vmul.f32 %v370, 0.35355338
      %v376 = vld [vmem:[%s307] sm:$0xff]
      %v377 = vadd.f32 %v375, %v376
      %v378 = vld [vmem:[#allocation2] sm:$0xff]
      %v379 = vsel %vm328, %v377, -inf
      %380 = vmax.xlane.f32.xlu0 %v379
      %v381 = vpop.xlane.xlu0 %380
      %v382 = vmax.f32 %v378, %v381
      %v383 = vsub.f32 %v378, %v382
      %v384 = vmul.f32 %v383, 1.442695
      %v385 = vpow.pop %v384
      %387 = vset.pattern.permute.xlu0 0
      %388 = vperm.xlu0 %387, %v382
      %v389 = vpop.permute.xlu0 %388
      %v391 = vsub.f32 %v377, %v389
      %v392 = vmul.f32 %v391, 1.442695
      %v393 = vpow.pop %v392
      %v394 = vld [vmem:[#allocation3] sm:$0xff]
      %v395 = vmul.f32 %v385, %v394
      %v396 = vsel %vm328, %v393, 0.0
      %397 = vadd.xlane.f32.xlu0 %v396
      %v398 = vpop.xlane.xlu0 %397
      %v399 = vadd.f32 %v395, %v398
      %vm400 = vcmask 7168
      %401 = vst.msk [vmem:[#allocation3] sm:$0xff] %vm400, %v399
      %v402 = vld [vmem:[#allocation4] sm:$0xff]
      %404 = vset.pattern.permute.xlu0 0
      %405 = vperm.xlu0 %404, %v385
      %v406 = vpop.permute.xlu0 %405
      %v408 = vmul.f32 %v406, %v402
      %v409 = vpack.c.bf16 %v393, %v393
      %v411 = vsel %vm328, %v409, 0
      %vm413 = vcmask 1043456
      %v415 = vsel %vm413, %v327, 0
      %417 = vmatprep.subr.bf16.mxu0 0
      %418 = vmatpush1.bf16.msra.mxu0 %v415
      %419 = vmatprep.subr.bf16.mxu0 0
      %420 = vmatpush1.bf16.msra.mxu0 0
      %421 = vmatprep.subr.bf16.mxu0 0
      %422 = vmatpush1.bf16.msra.mxu0 0
      %423 = vmatprep.subr.bf16.mxu0 0
      %424 = vmatpush1.bf16.msra.mxu0 0
      %425 = vmatprep.subr.bf16.mxu0 0
      %426 = vmatpush1.bf16.msra.mxu0 0
      %427 = vmatprep.subr.bf16.mxu0 0
      %428 = vmatpush1.bf16.msra.mxu0 0
      %429 = vmatprep.subr.bf16.mxu0 0
      %430 = vmatpush1.bf16.msra.mxu0 0
      %431 = vmatprep.subr.bf16.mxu0 0
      %432 = vmatpush1.bf16.msra.mxu0 0
      %433 = vmatprep.subr.bf16.mxu0 0
      %434 = vmatpush1.bf16.msra.mxu0 0
      %435 = vmatprep.subr.bf16.mxu0 0
      %436 = vmatpush1.bf16.msra.mxu0 0
      %437 = vmatprep.subr.bf16.mxu0 0
      %438 = vmatpush1.bf16.msra.mxu0 0
      %439 = vmatprep.subr.bf16.mxu0 0
      %440 = vmatpush1.bf16.msra.mxu0 0
      %441 = vmatprep.subr.bf16.mxu0 0
      %442 = vmatpush1.bf16.msra.mxu0 0
      %443 = vmatprep.subr.bf16.mxu0 0
      %444 = vmatpush1.bf16.msra.mxu0 0
      %445 = vmatprep.subr.bf16.mxu0 0
      %446 = vmatpush1.bf16.msra.mxu0 0
      %447 = vmatprep.subr.bf16.mxu0 0
      %448 = vmatpush1.bf16.msra.mxu0 0
      %449 = vmatprep.mubr.bf16.mxu0 0
      %450 = vmatmul.mubr.bf16.gmra.mrb[0].mxu0 %v411
      %v451 = vpop.f32.mrb[0].mxu0
      %v452 = vadd.f32 0.0, %v451
      %v453 = vpop.f32.mrb[0].mxu0
      %v454 = vpop.f32.mrb[0].mxu0
      %v455 = vpop.f32.mrb[0].mxu0
      %456 = vdwg.mxu0
      %v457 = vadd.f32 %v408, %v452
      %458 = vst.msk [vmem:[#allocation4] sm:$0xff] %vm328, %v457
      %459 = vst.msk [vmem:[#allocation2] sm:$0xff] %vm400, %v382
      // Predicated region
      $region41: #{swapllama_forward.17} parent=35 // pred_check
        %p460 = pneg %p316
      $region42: #{swapllama_forward.17} parent=35 // pred_check_branch
        %462 = sbr.rel (%p460) target = $region44
      $region43: #{swapllama_forward.17} parent=35 // pred_region
        %v463 = vld [vmem:[#allocation4] sm:$0xff]
        %v464 = vld [vmem:[#allocation3] sm:$0xff]
        %v465 = vrcp.pop %v464
        %467 = vset.pattern.permute.xlu0 0
        %468 = vperm.xlu0 %467, %v465
        %v469 = vpop.permute.xlu0 %468
        %v471 = vmul.f32 %v463, %v469
        %v472 = vpack.c.bf16 %v471, %v471
        %vm473 = vcmask 60416
        %474 = vst.msk [vmem:[%s314] sm:$0xf] %vm473, %v472
      $region44: #{swapllama_forward.17} parent=35 // pred_fallthru
        _
      %p475 = scmp.lt.s32.totalorder %s20, 7
      %s476 = scalar_select %p475, %s20, 7
      %p477 = scmp.lt.s32.totalorder %s21, 0
      %s478 = scalar_select %p477, %s21, 0
      %s479 = sadd.s32 %s478, %s476
      %s480 = smul.addr %s479, 4
      %s481 = scalar_lea.vmem %s4, %s480
      // Predicated region
      $region45: #{swapllama_forward.17} parent=35 // pred_check
        %p482 = pneg %p166
      $region46: #{swapllama_forward.17} parent=35 // pred_check_branch
        %484 = sbr.rel (%p482) target = $region48
      $region47: #{swapllama_forward.17} parent=35 // pred_region
        _
      $region48: #{swapllama_forward.17} parent=35 // pred_fallthru
        _
    $region36: #{swapllama_forward.17} parent=5 // pred_fallthru
      _
    %p485 = scmp.le.s32.totalorder 2, %s10
    // Predicated region
    $region49: #{swapllama_forward.17} parent=5 // pred_check
      %p486 = pneg %p485
    $region50: #{swapllama_forward.17} parent=5 // pred_check_branch
      %488 = sbr.rel (%p486) target = $region52
    $region51: #{swapllama_forward.17} parent=5 // pred_region
      %s489 = ssub.s32 %s10, 2
      // Predicated region
      $region53: #{swapllama_forward.17} parent=51 // pred_check
        %p490 = pneg %p172
      $region54: #{swapllama_forward.17} parent=51 // pred_check_branch
        %492 = sbr.rel (%p490) target = $region56
      $region55: #{swapllama_forward.17} parent=51 // pred_region
        %p493 = scmp.lt.s32.totalorder %s23, 7
        %s494 = scalar_select %p493, %s23, 7
        %p495 = scmp.lt.s32.totalorder %s24, 0
        %s496 = scalar_select %p495, %s24, 0
        %s497 = sadd.s32 %s496, %s494
        %s498 = smul.addr %s497, 4
        %s499 = scalar_lea.vmem %s4, %s498
      $region56: #{swapllama_forward.17} parent=51 // pred_fallthru
        _
    $region52: #{swapllama_forward.17} parent=5 // pred_fallthru
      _
  $region6: #{swapllama_forward.17} parent=0 // loop_footer
    %s14 = sadd.s32 1, %s10
  $region7: #{swapllama_forward.17} parent=0 // loop_footer_branch
    %9 = sbr.rel target = $region3
  $region8: #{swapllama_forward.17} parent=0 // loop_exit
    _

// kernel: swapllama_forward.20
$region0: #{swapllama_forward.20}
  #allocation0 [shape = 'u32[]', space=smem, size = 0x4, offset = 0x4, fixed_abs, tag = 'smem constant byte address 0x4 - core index']
  #allocation1 [shape = 'u32[144,128]{1,0:T(1,128)}', space=vmem, size = 0x12000, scoped, tag = 'internal scratch']
  #allocation2 [shape = 'f32[16,96]{1,0:T(8,128)}', space=vmem, size = 0x2000, scoped, tag = 'scratch operand']
  #allocation3 [shape = 'f32[16,96]{1,0:T(8,128)}', space=vmem, size = 0x2000, scoped, tag = 'scratch operand']
  %s0 = inlined_call_operand.vmem [shape: f32[16,1], index: 0, kind: input, shape index: {}]
  %s1 = inlined_call_operand.vmem [shape: f32[1,32], index: 1, kind: input, shape index: {}]
  %s2 = inlined_call_operand.vmem [shape: bf16[16,32], index: 2, kind: input, shape index: {}]
  %s3 = inlined_call_operand.vmem [shape: bf16[32,96], index: 3, kind: input, shape index: {}]
  %s4 = inlined_call_operand.vmem [shape: bf16[32,96], index: 4, kind: input, shape index: {}]
  %s5 = inlined_call_operand.vmem [shape: bf16[16,96], index: 5, kind: output, shape index: {}]
  %s6 = sld [smem:[#allocation0]]
  $region38: #{swapllama_forward.20} parent=0
    _
  %s8 = ssub.s32 1, %s6
  %s9 = scalar_select 0, %s8, %s6
  // Predicated region
  $region2: #{swapllama_forward.20} parent=0 // pred_check
    _
  $region3: #{swapllama_forward.20} parent=0 // pred_check_branch
    %11 = sbr.rel (0) target = $region5
  $region4: #{swapllama_forward.20} parent=0 // pred_region
    _
  $region5: #{swapllama_forward.20} parent=0 // pred_fallthru
    _
  // Predicated region
  $region6: #{swapllama_forward.20} parent=0 // pred_check
    _
  $region7: #{swapllama_forward.20} parent=0 // pred_check_branch
    %13 = sbr.rel (0) target = $region9
  $region8: #{swapllama_forward.20} parent=0 // pred_region
    _
  $region9: #{swapllama_forward.20} parent=0 // pred_fallthru
    _
  // Predicated region
  $region10: #{swapllama_forward.20} parent=0 // pred_check
    _
  $region11: #{swapllama_forward.20} parent=0 // pred_check_branch
    %15 = sbr.rel (0) target = $region13
  $region12: #{swapllama_forward.20} parent=0 // pred_region
    _
  $region13: #{swapllama_forward.20} parent=0 // pred_fallthru
    _
  // Predicated region
  $region14: #{swapllama_forward.20} parent=0 // pred_check
    _
  $region15: #{swapllama_forward.20} parent=0 // pred_check_branch
    %17 = sbr.rel (0) target = $region17
  $region16: #{swapllama_forward.20} parent=0 // pred_region
    _
  $region17: #{swapllama_forward.20} parent=0 // pred_fallthru
    _
  // Predicated region
  $region18: #{swapllama_forward.20} parent=0 // pred_check
    _
  $region19: #{swapllama_forward.20} parent=0 // pred_check_branch
    %19 = sbr.rel (0) target = $region21
  $region20: #{swapllama_forward.20} parent=0 // pred_region
    _
  $region21: #{swapllama_forward.20} parent=0 // pred_fallthru
    _
  %p21 = scmp.eq.s32.totalorder 0, 0
  // Predicated region
  $region22: #{swapllama_forward.20} parent=0 // pred_check
    %p22 = pneg %p21
  $region23: #{swapllama_forward.20} parent=0 // pred_check_branch
    %24 = sbr.rel (%p22) target = $region25
  $region24: #{swapllama_forward.20} parent=0 // pred_region
    %vm25 = vcmask 785408
    %26 = vst.msk [vmem:[#allocation2] sm:$0xff] %vm25, 0.0
    %27 = vst.msk [vmem:[#allocation2 + $0x8] sm:$0xff] %vm25, 0.0
    %28 = vst.msk [vmem:[#allocation3] sm:$0xff] %vm25, 0.0
    %29 = vst.msk [vmem:[#allocation3 + $0x8] sm:$0xff] %vm25, 0.0
  $region25: #{swapllama_forward.20} parent=0 // pred_fallthru
    _
  %v30 = vld [vmem:[%s2] sm:$0xf]
  %v31 = vld [vmem:[%s2 + $0x4] sm:$0xf]
  %v32 = vunpack.c.l.bf16 %v30
  %v33 = vunpack.c.l.bf16 %v31
  %v34 = vld [vmem:[%s0] sm:$0xff]
  %v35 = vld [vmem:[%s0 + $0x8] sm:$0xff]
  %37 = vset.pattern.permute.xlu0 0
  %38 = vperm.xlu0 %37, %v34
  %v39 = vpop.permute.xlu0 %38
  %42 = vset.pattern.permute.xlu0 0
  %43 = vperm.xlu0 %42, %v35
  %v44 = vpop.permute.xlu0 %43
  %v46 = vmul.f32 %v32, %v39
  %v47 = vmul.f32 %v33, %v44
  %v48 = vld [vmem:[%s1] sm:$0x1]
  %v50 = vlaneseq
  %v51 = vshrl.u32 %v50, 7
  %v52 = vsub.s32 0, %v51
  %v53 = vrot.slane %v48, %v52
  %v55 = vmul.f32 %v46, %v53
  %v56 = vmul.f32 %v47, %v53
  %v57 = vpack.c.bf16 %v56, %v55
  %v58 = vld [vmem:[#allocation2] sm:$0xff]
  %v59 = vld [vmem:[#allocation2 + $0x8] sm:$0xff]
  %v60 = vld [vmem:[%s3] sm:$0xf]
  %v61 = vld [vmem:[%s3 + $0x4] sm:$0xf]
  %v62 = vld [vmem:[%s3 + $0x8] sm:$0xf]
  %v63 = vld [vmem:[%s3 + $0xc] sm:$0xf]
  %v68 = vunpack.c.l.b16 %v60
  %v69 = vunpack.c.l.b16 %v61
  %v70 = vunpack.c.l.b16 %v62
  %v71 = vunpack.c.l.b16 %v63
  %v72 = vpack.c.b16 %v69, %v68
  %v73 = vpack.c.b16 %v71, %v70
  %vm76 = vcmask 261120
  %v78 = vsel %vm76, %v57, 0
  %80 = vmatprep.subr.bf16.mxu0 0
  %81 = vmatpush1.bf16.msra.mxu0 %v72
  %82 = vmatprep.subr.bf16.mxu0 0
  %83 = vmatpush1.bf16.msra.mxu0 %v73
  %84 = vmatprep.subr.bf16.mxu0 0
  %85 = vmatpush1.bf16.msra.mxu0 0
  %86 = vmatprep.subr.bf16.mxu0 0
  %87 = vmatpush1.bf16.msra.mxu0 0
  %88 = vmatprep.subr.bf16.mxu0 0
  %89 = vmatpush1.bf16.msra.mxu0 0
  %90 = vmatprep.subr.bf16.mxu0 0
  %91 = vmatpush1.bf16.msra.mxu0 0
  %92 = vmatprep.subr.bf16.mxu0 0
  %93 = vmatpush1.bf16.msra.mxu0 0
  %94 = vmatprep.subr.bf16.mxu0 0
  %95 = vmatpush1.bf16.msra.mxu0 0
  %96 = vmatprep.subr.bf16.mxu0 0
  %97 = vmatpush1.bf16.msra.mxu0 0
  %98 = vmatprep.subr.bf16.mxu0 0
  %99 = vmatpush1.bf16.msra.mxu0 0
  %100 = vmatprep.subr.bf16.mxu0 0
  %101 = vmatpush1.bf16.msra.mxu0 0
  %102 = vmatprep.subr.bf16.mxu0 0
  %103 = vmatpush1.bf16.msra.mxu0 0
  %104 = vmatprep.subr.bf16.mxu0 0
  %105 = vmatpush1.bf16.msra.mxu0 0
  %106 = vmatprep.subr.bf16.mxu0 0
  %107 = vmatpush1.bf16.msra.mxu0 0
  %108 = vmatprep.subr.bf16.mxu0 0
  %109 = vmatpush1.bf16.msra.mxu0 0
  %110 = vmatprep.subr.bf16.mxu0 0
  %111 = vmatpush1.bf16.msra.mxu0 0
  %112 = vmatprep.mubr.bf16.mxu0 0
  %113 = vmatmul.mubr.bf16.gmra.mrb[0].mxu0 %v78
  %v114 = vpop.f32.mrb[0].mxu0
  %v115 = vadd.f32 0.0, %v114
  %v116 = vpop.f32.mrb[0].mxu0
  %v117 = vpop.f32.mrb[0].mxu0
  %v118 = vadd.f32 0.0, %v117
  %v119 = vpop.f32.mrb[0].mxu0
  %120 = vdwg.mxu0
  %v121 = vadd.f32 %v58, %v115
  %v122 = vadd.f32 %v59, %v118
  %vm123 = vcmask 785408
  %124 = vst.msk [vmem:[#allocation2] sm:$0xff] %vm123, %v121
  %125 = vst.msk [vmem:[#allocation2 + $0x8] sm:$0xff] %vm123, %v122
  %v126 = vld [vmem:[#allocation3] sm:$0xff]
  %v127 = vld [vmem:[#allocation3 + $0x8] sm:$0xff]
  %v128 = vld [vmem:[%s4] sm:$0xf]
  %v129 = vld [vmem:[%s4 + $0x4] sm:$0xf]
  %v130 = vld [vmem:[%s4 + $0x8] sm:$0xf]
  %v131 = vld [vmem:[%s4 + $0xc] sm:$0xf]
  %v136 = vunpack.c.l.b16 %v128
  %v137 = vunpack.c.l.b16 %v129
  %v138 = vunpack.c.l.b16 %v130
  %v139 = vunpack.c.l.b16 %v131
  %v140 = vpack.c.b16 %v137, %v136
  %v141 = vpack.c.b16 %v139, %v138
  %144 = vmatprep.subr.bf16.mxu0 0
  %145 = vmatpush1.bf16.msra.mxu0 %v140
  %146 = vmatprep.subr.bf16.mxu0 0
  %147 = vmatpush1.bf16.msra.mxu0 %v141
  %148 = vmatprep.subr.bf16.mxu0 0
  %149 = vmatpush1.bf16.msra.mxu0 0
  %150 = vmatprep.subr.bf16.mxu0 0
  %151 = vmatpush1.bf16.msra.mxu0 0
  %152 = vmatprep.subr.bf16.mxu0 0
  %153 = vmatpush1.bf16.msra.mxu0 0
  %154 = vmatprep.subr.bf16.mxu0 0
  %155 = vmatpush1.bf16.msra.mxu0 0
  %156 = vmatprep.subr.bf16.mxu0 0
  %157 = vmatpush1.bf16.msra.mxu0 0
  %158 = vmatprep.subr.bf16.mxu0 0
  %159 = vmatpush1.bf16.msra.mxu0 0
  %160 = vmatprep.subr.bf16.mxu0 0
  %161 = vmatpush1.bf16.msra.mxu0 0
  %162 = vmatprep.subr.bf16.mxu0 0
  %163 = vmatpush1.bf16.msra.mxu0 0
  %164 = vmatprep.subr.bf16.mxu0 0
  %165 = vmatpush1.bf16.msra.mxu0 0
  %166 = vmatprep.subr.bf16.mxu0 0
  %167 = vmatpush1.bf16.msra.mxu0 0
  %168 = vmatprep.subr.bf16.mxu0 0
  %169 = vmatpush1.bf16.msra.mxu0 0
  %170 = vmatprep.subr.bf16.mxu0 0
  %171 = vmatpush1.bf16.msra.mxu0 0
  %172 = vmatprep.subr.bf16.mxu0 0
  %173 = vmatpush1.bf16.msra.mxu0 0
  %174 = vmatprep.subr.bf16.mxu0 0
  %175 = vmatpush1.bf16.msra.mxu0 0
  %176 = vmatprep.mubr.bf16.mxu0 0
  %177 = vmatmul.mubr.bf16.gmra.mrb[0].mxu0 %v78
  %v178 = vpop.f32.mrb[0].mxu0
  %v179 = vadd.f32 0.0, %v178
  %v180 = vpop.f32.mrb[0].mxu0
  %v181 = vpop.f32.mrb[0].mxu0
  %v182 = vadd.f32 0.0, %v181
  %v183 = vpop.f32.mrb[0].mxu0
  %184 = vdwg.mxu0
  %v185 = vadd.f32 %v126, %v179
  %v186 = vadd.f32 %v127, %v182
  %187 = vst.msk [vmem:[#allocation3] sm:$0xff] %vm123, %v185
  %188 = vst.msk [vmem:[#allocation3 + $0x8] sm:$0xff] %vm123, %v186
  // Predicated region
  $region26: #{swapllama_forward.20} parent=0 // pred_check
    %p189 = pneg %p21
  $region27: #{swapllama_forward.20} parent=0 // pred_check_branch
    %191 = sbr.rel (%p189) target = $region29
  $region28: #{swapllama_forward.20} parent=0 // pred_region
    %v192 = vld [vmem:[#allocation2] sm:$0xff]
    %v193 = vld [vmem:[#allocation2 + $0x8] sm:$0xff]
    %v194 = vxor.u32 %v192, 2147483648
    %v195 = vxor.u32 %v193, 2147483648
    %v196 = vmul.f32 %v194, 1.442695
    %v197 = vpow.pop %v196
    %v198 = vmul.f32 %v195, 1.442695
    %v199 = vpow.pop %v198
    %v200 = vadd.f32 %v197, 1.0
    %v201 = vadd.f32 %v199, 1.0
    %v202 = vrcp.pop %v200
    %v203 = vmul.f32 1.0, %v202
    %v204 = vrcp.pop %v201
    %v205 = vmul.f32 1.0, %v204
    %v206 = vmul.f32 %v192, %v203
    %v207 = vmul.f32 %v193, %v205
    %v208 = vld [vmem:[#allocation3] sm:$0xff]
    %v209 = vld [vmem:[#allocation3 + $0x8] sm:$0xff]
    %v210 = vmul.f32 %v206, %v208
    %v211 = vmul.f32 %v207, %v209
    %v212 = vpack.c.bf16 %v211, %v210
    %v214 = vunpack.c.l.b16 %v212
    %v215 = vunpack.c.h.b16 %v212
    %v216 = vpack.c.b16 %v214, %v214
    %v217 = vpack.c.b16 %v215, %v215
    %vm220 = vcmask 781312
    %221 = vst.msk [vmem:[%s5] sm:$0xf] %vm220, %v216
    %222 = vst.msk [vmem:[%s5 + $0x4] sm:$0xf] %vm220, %v217
  $region29: #{swapllama_forward.20} parent=0 // pred_fallthru
    _
  // Predicated region
  $region30: #{swapllama_forward.20} parent=0 // pred_check
    _
  $region31: #{swapllama_forward.20} parent=0 // pred_check_branch
    %224 = sbr.rel (0) target = $region33
  $region32: #{swapllama_forward.20} parent=0 // pred_region
    _
  $region33: #{swapllama_forward.20} parent=0 // pred_fallthru
    _
  // Predicated region
  $region34: #{swapllama_forward.20} parent=0 // pred_check
    _
  $region35: #{swapllama_forward.20} parent=0 // pred_check_branch
    %226 = sbr.rel (0) target = $region37
  $region36: #{swapllama_forward.20} parent=0 // pred_region
    _
  $region37: #{swapllama_forward.20} parent=0 // pred_fallthru
    _

// kernel: swapllama_forward.21
$region0: #{swapllama_forward.21}
  #allocation0 [shape = 'u32[]', space=smem, size = 0x4, offset = 0x4, fixed_abs, tag = 'smem constant byte address 0x4 - core index']
  #allocation1 [shape = 'u32[144,128]{1,0:T(1,128)}', space=vmem, size = 0x12000, scoped, tag = 'internal scratch']
  #allocation2 [shape = 'f32[16,32]{1,0:T(8,128)}', space=vmem, size = 0x2000, scoped, tag = 'scratch operand']
  %s0 = inlined_call_operand.vmem [shape: bf16[16,96], index: 0, kind: input, shape index: {}]
  %s1 = inlined_call_operand.vmem [shape: bf16[96,32], index: 1, kind: input, shape index: {}]
  %s2 = inlined_call_operand.vmem [shape: bf16[16,32], index: 2, kind: input, shape index: {}]
  %s3 = inlined_call_operand.vmem [shape: bf16[16,32], index: 3, kind: output, shape index: {}]
  %s4 = sld [smem:[#allocation0]]
  $region30: #{swapllama_forward.21} parent=0
    _
  %s6 = ssub.s32 1, %s4
  %s7 = scalar_select 0, %s6, %s4
  // Predicated region
  $region2: #{swapllama_forward.21} parent=0 // pred_check
    _
  $region3: #{swapllama_forward.21} parent=0 // pred_check_branch
    %9 = sbr.rel (0) target = $region5
  $region4: #{swapllama_forward.21} parent=0 // pred_region
    _
  $region5: #{swapllama_forward.21} parent=0 // pred_fallthru
    _
  // Predicated region
  $region6: #{swapllama_forward.21} parent=0 // pred_check
    _
  $region7: #{swapllama_forward.21} parent=0 // pred_check_branch
    %11 = sbr.rel (0) target = $region9
  $region8: #{swapllama_forward.21} parent=0 // pred_region
    _
  $region9: #{swapllama_forward.21} parent=0 // pred_fallthru
    _
  // Predicated region
  $region10: #{swapllama_forward.21} parent=0 // pred_check
    _
  $region11: #{swapllama_forward.21} parent=0 // pred_check_branch
    %13 = sbr.rel (0) target = $region13
  $region12: #{swapllama_forward.21} parent=0 // pred_region
    _
  $region13: #{swapllama_forward.21} parent=0 // pred_fallthru
    _
  %p15 = scmp.eq.s32.totalorder 0, 0
  // Predicated region
  $region14: #{swapllama_forward.21} parent=0 // pred_check
    %p16 = pneg %p15
  $region15: #{swapllama_forward.21} parent=0 // pred_check_branch
    %18 = sbr.rel (%p16) target = $region17
  $region16: #{swapllama_forward.21} parent=0 // pred_region
    %vm19 = vcmask 261120
    %20 = vst.msk [vmem:[#allocation2] sm:$0xff] %vm19, 0.0
    %21 = vst.msk [vmem:[#allocation2 + $0x8] sm:$0xff] %vm19, 0.0
  $region17: #{swapllama_forward.21} parent=0 // pred_fallthru
    _
  %v22 = vld [vmem:[#allocation2] sm:$0xff]
  %v23 = vld [vmem:[#allocation2 + $0x8] sm:$0xff]
  %v24 = vld [vmem:[%s0] sm:$0xf]
  %v25 = vld [vmem:[%s0 + $0x4] sm:$0xf]
  %v26 = vld [vmem:[%s1] sm:$0xf]
  %v27 = vld [vmem:[%s1 + $0x4] sm:$0xf]
  %v28 = vld [vmem:[%s1 + $0x8] sm:$0xf]
  %v29 = vld [vmem:[%s1 + $0xc] sm:$0xf]
  %v30 = vld [vmem:[%s1 + $0x10] sm:$0xf]
  %v31 = vld [vmem:[%s1 + $0x14] sm:$0xf]
  %v32 = vld [vmem:[%s1 + $0x18] sm:$0xf]
  %v33 = vld [vmem:[%s1 + $0x1c] sm:$0xf]
  %v34 = vld [vmem:[%s1 + $0x20] sm:$0xf]
  %v35 = vld [vmem:[%s1 + $0x24] sm:$0xf]
  %v36 = vld [vmem:[%s1 + $0x28] sm:$0xf]
  %v37 = vld [vmem:[%s1 + $0x2c] sm:$0xf]
  %v40 = vunpack.c.l.b16 %v24
  %v41 = vunpack.c.l.b16 %v25
  %v42 = vpack.c.b16 %v41, %v40
  %v55 = vunpack.c.l.b16 %v26
  %v56 = vunpack.c.l.b16 %v27
  %v57 = vunpack.c.l.b16 %v28
  %v58 = vunpack.c.l.b16 %v29
  %v59 = vunpack.c.l.b16 %v30
  %v60 = vunpack.c.l.b16 %v31
  %v61 = vunpack.c.l.b16 %v32
  %v62 = vunpack.c.l.b16 %v33
  %v63 = vunpack.c.l.b16 %v34
  %v64 = vunpack.c.l.b16 %v35
  %v65 = vunpack.c.l.b16 %v36
  %v66 = vunpack.c.l.b16 %v37
  %v67 = vpack.c.b16 %v56, %v55
  %v68 = vpack.c.b16 %v58, %v57
  %v69 = vpack.c.b16 %v60, %v59
  %v70 = vpack.c.b16 %v62, %v61
  %v71 = vpack.c.b16 %v64, %v63
  %v72 = vpack.c.b16 %v66, %v65
  %vm79 = vcmask 785408
  %v81 = vsel %vm79, %v42, 0
  %83 = vmatprep.subr.bf16.mxu0 0
  %84 = vmatpush1.bf16.msra.mxu0 %v67
  %85 = vmatprep.subr.bf16.mxu0 0
  %86 = vmatpush1.bf16.msra.mxu0 %v68
  %87 = vmatprep.subr.bf16.mxu0 0
  %88 = vmatpush1.bf16.msra.mxu0 %v69
  %89 = vmatprep.subr.bf16.mxu0 0
  %90 = vmatpush1.bf16.msra.mxu0 %v70
  %91 = vmatprep.subr.bf16.mxu0 0
  %92 = vmatpush1.bf16.msra.mxu0 %v71
  %93 = vmatprep.subr.bf16.mxu0 0
  %94 = vmatpush1.bf16.msra.mxu0 %v72
  %95 = vmatprep.subr.bf16.mxu0 0
  %96 = vmatpush1.bf16.msra.mxu0 0
  %97 = vmatprep.subr.bf16.mxu0 0
  %98 = vmatpush1.bf16.msra.mxu0 0
  %99 = vmatprep.subr.bf16.mxu0 0
  %100 = vmatpush1.bf16.msra.mxu0 0
  %101 = vmatprep.subr.bf16.mxu0 0
  %102 = vmatpush1.bf16.msra.mxu0 0
  %103 = vmatprep.subr.bf16.mxu0 0
  %104 = vmatpush1.bf16.msra.mxu0 0
  %105 = vmatprep.subr.bf16.mxu0 0
  %106 = vmatpush1.bf16.msra.mxu0 0
  %107 = vmatprep.subr.bf16.mxu0 0
  %108 = vmatpush1.bf16.msra.mxu0 0
  %109 = vmatprep.subr.bf16.mxu0 0
  %110 = vmatpush1.bf16.msra.mxu0 0
  %111 = vmatprep.subr.bf16.mxu0 0
  %112 = vmatpush1.bf16.msra.mxu0 0
  %113 = vmatprep.subr.bf16.mxu0 0
  %114 = vmatpush1.bf16.msra.mxu0 0
  %115 = vmatprep.mubr.bf16.mxu0 0
  %116 = vmatmul.mubr.bf16.gmra.mrb[0].mxu0 %v81
  %v117 = vpop.f32.mrb[0].mxu0
  %v118 = vadd.f32 0.0, %v117
  %v119 = vpop.f32.mrb[0].mxu0
  %v120 = vpop.f32.mrb[0].mxu0
  %v121 = vadd.f32 0.0, %v120
  %v122 = vpop.f32.mrb[0].mxu0
  %123 = vdwg.mxu0
  %v124 = vadd.f32 %v22, %v118
  %v125 = vadd.f32 %v23, %v121
  %vm126 = vcmask 261120
  %127 = vst.msk [vmem:[#allocation2] sm:$0xff] %vm126, %v124
  %128 = vst.msk [vmem:[#allocation2 + $0x8] sm:$0xff] %vm126, %v125
  // Predicated region
  $region18: #{swapllama_forward.21} parent=0 // pred_check
    %p129 = pneg %p15
  $region19: #{swapllama_forward.21} parent=0 // pred_check_branch
    %131 = sbr.rel (%p129) target = $region21
  $region20: #{swapllama_forward.21} parent=0 // pred_region
    %v132 = vld [vmem:[%s2] sm:$0xf]
    %v133 = vld [vmem:[%s2 + $0x4] sm:$0xf]
    %v134 = vunpack.c.l.bf16 %v132
    %v135 = vunpack.c.l.bf16 %v133
    %v136 = vld [vmem:[#allocation2] sm:$0xff]
    %v137 = vld [vmem:[#allocation2 + $0x8] sm:$0xff]
    %v138 = vadd.f32 %v134, %v136
    %v139 = vadd.f32 %v135, %v137
    %v140 = vpack.c.bf16 %v139, %v138
    %v142 = vunpack.c.l.b16 %v140
    %v143 = vunpack.c.h.b16 %v140
    %v144 = vpack.c.b16 %v142, %v142
    %v145 = vpack.c.b16 %v143, %v143
    %vm148 = vcmask 257024
    %149 = vst.msk [vmem:[%s3] sm:$0xf] %vm148, %v144
    %150 = vst.msk [vmem:[%s3 + $0x4] sm:$0xf] %vm148, %v145
  $region21: #{swapllama_forward.21} parent=0 // pred_fallthru
    _
  // Predicated region
  $region22: #{swapllama_forward.21} parent=0 // pred_check
    _
  $region23: #{swapllama_forward.21} parent=0 // pred_check_branch
    %152 = sbr.rel (0) target = $region25
  $region24: #{swapllama_forward.21} parent=0 // pred_region
    _
  $region25: #{swapllama_forward.21} parent=0 // pred_fallthru
    _
  // Predicated region
  $region26: #{swapllama_forward.21} parent=0 // pred_check
    _
  $region27: #{swapllama_forward.21} parent=0 // pred_check_branch
    %154 = sbr.rel (0) target = $region29
  $region28: #{swapllama_forward.21} parent=0 // pred_region
    _
  $region29: #{swapllama_forward.21} parent=0 // pred_fallthru
    _

// kernel: swapllama_forward.29
$region0: #{swapllama_forward.29}
  #allocation0 [shape = 'u32[]', space=smem, size = 0x4, offset = 0x4, fixed_abs, tag = 'smem constant byte address 0x4 - core index']
  #allocation1 [shape = 'u32[144,128]{1,0:T(1,128)}', space=vmem, size = 0x12000, scoped, tag = 'internal scratch']
  %s0 = inlined_call_operand.vmem [shape: f32[1,32], index: 0, kind: input, shape index: {}]
  %s1 = inlined_call_operand.vmem [shape: bf16[16,32], index: 1, kind: input, shape index: {}]
  %s2 = inlined_call_operand.hbm [shape: f32[16,32], index: 2, kind: output, shape index: {}]
  %s3 = sld [smem:[#allocation0]]
  $region18: #{swapllama_forward.29} parent=0
    _
  %s5 = ssub.s32 1, %s3
  %s6 = scalar_select 0, %s5, %s3
  $region1: #{swapllama_forward.29} parent=0
    #allocation2 [shape = 'u8[8192]{0}', space=vmem, size = 0x2000, scoped, tag = 'output window, operand 0, single buffered']
    #allocation3 [shape = 's32[1]{0}', space=sflag, size = 0x4, scoped, tag = 'scoped memory for swapllama_forward.29']
    %7 = vsyncpa [#allocation3], 0
    // Predicated region
    $region2: #{swapllama_forward.29} parent=1 // pred_check
      _
    $region3: #{swapllama_forward.29} parent=1 // pred_check_branch
      %9 = sbr.rel (0) target = $region5
    $region4: #{swapllama_forward.29} parent=1 // pred_region
      _
    $region5: #{swapllama_forward.29} parent=1 // pred_fallthru
      _
    // Predicated region
    $region6: #{swapllama_forward.29} parent=1 // pred_check
      _
    $region7: #{swapllama_forward.29} parent=1 // pred_check_branch
      %11 = sbr.rel (0) target = $region9
    $region8: #{swapllama_forward.29} parent=1 // pred_region
      _
    $region9: #{swapllama_forward.29} parent=1 // pred_fallthru
      _
    %v12 = vld [vmem:[%s1] sm:$0xf]
    %v13 = vld [vmem:[%s1 + $0x4] sm:$0xf]
    %v14 = vunpack.c.l.bf16 %v12
    %v15 = vunpack.c.l.bf16 %v13
    %v16 = vmul.f32 %v14, %v14
    %v17 = vmul.f32 %v15, %v15
    %vm18 = vcmask 261120
    %v19 = vsel %vm18, %v16, 0.0
    %20 = vadd.xlane.f32.xlu0 %v19
    %v21 = vpop.xlane.xlu0 %20
    %v22 = vsel %vm18, %v17, 0.0
    %23 = vadd.xlane.f32.xlu0 %v22
    %v24 = vpop.xlane.xlu0 %23
    %v25 = vrcp.pop 32.0
    %v26 = vmul.f32 %v21, %v25
    %v27 = vmul.f32 %v24, %v25
    %v28 = vadd.f32 %v26, 1e-05
    %v29 = vadd.f32 %v27, 1e-05
    %v30 = vrsqrt.pop %v28
    %v31 = vrsqrt.pop %v29
    %v32 = vmul.f32 %v14, %v30
    %v33 = vmul.f32 %v15, %v31
    %v34 = vld [vmem:[%s0] sm:$0x1]
    %v36 = vlaneseq
    %v37 = vshrl.u32 %v36, 7
    %v38 = vsub.s32 0, %v37
    %v39 = vrot.slane %v34, %v38
    %v41 = vmul.f32 %v32, %v39
    %v42 = vmul.f32 %v33, %v39
    %43 = vst.msk [vmem:[#allocation2] sm:$0xff] %vm18, %v41
    %44 = vst.msk [vmem:[#allocation2 + $0x8] sm:$0xff] %vm18, %v42
    // Predicated region
    $region10: #{swapllama_forward.29} parent=1 // pred_check
      _
    $region11: #{swapllama_forward.29} parent=1 // pred_check_branch
      %46 = sbr.rel (0) target = $region13
    $region12: #{swapllama_forward.29} parent=1 // pred_region
      %s48 = ssub.s32 256, 256
      %49 = vsyncadd [#allocation3], %s48
      %s50 = sshll.u32 [#allocation2], 4
      %s51 = int_to_ptr.vmem [resolvable:$true] %s50
      %56 = dma.vmem_to_hbm [thread:$0]  %s51, 256, %s2, [#allocation3], 128, 128, 8
    $region13: #{swapllama_forward.29} parent=1 // pred_fallthru
      _
    // Predicated region
    $region14: #{swapllama_forward.29} parent=1 // pred_check
      _
    $region15: #{swapllama_forward.29} parent=1 // pred_check_branch
      %58 = sbr.rel (0) target = $region17
    $region16: #{swapllama_forward.29} parent=1 // pred_region
      %59 = dma.done [#allocation3], 256
    $region17: #{swapllama_forward.29} parent=1 // pred_fallthru
      _
    %60 = vsyncpa [#allocation3], 1

</llo_original>
